<compile_context>
chip_gen: v7x
topology: tpu7x:2x2x1
jax: 0.10.0
libtpu: 0.0.40
codegen_flags: <defaults>
</compile_context>

<pallas_src>
import functools
import math

import jax
import jax.numpy as jnp
from jax import lax
from jax.experimental import pallas as pl
from jax.experimental.pallas import tpu as pltpu

# ----------------------------------------------------------------------------
# Small synthetic T5 config (T5Config with hidden_size overridden per the module)
# ----------------------------------------------------------------------------
VOCAB = 64
D_MODEL = 32          # args.latent_size / config.hidden_size
N_HEADS = 4
D_KV = 8
D_FF = 64
N_LAYERS = 2
NUM_BUCKETS = 32
MAX_DIST = 128
EPS = 1e-6            # T5LayerNorm eps
NUM_FEATURE = 4


# ----------------------------------------------------------------------------
# Fused Pallas kernel: full encoder stack for one batch item per grid step
# ----------------------------------------------------------------------------
def _rmsnorm(x, w):
    # T5LayerNorm = RMSNorm (no mean subtraction, no bias); f32 VPU math.
    var = jnp.mean(x * x, axis=-1, keepdims=True)
    return x * lax.rsqrt(var + EPS) * w


def t5_encoder_kernel(x_ref, posb_ref, mask_ref,
                      ln1_ref, wqkv_ref, wo_ref, ln2_ref, wi_ref, wo2_ref,
                      fln_ref, out_ref, *, S, nf):
    x = x_ref[...].reshape(S, D_MODEL)                        # (S, D) f32

    # Single additive attention bias (shared rel-pos bias + padding mask), one add.
    neg = (1.0 - mask_ref[...]) * -1e9                        # (1, 1, S) f32
    bias = posb_ref[...] + neg                                # (H, S, S) f32

    # TODO(synk): at real T5 sizes convert this static layer unroll into a grid axis so
    # per-layer weights are streamed/double-buffered instead of fully VMEM-resident.
    for l in range(N_LAYERS):
        # ---- self-attention sublayer --------------------------------------
        normed = _rmsnorm(x, ln1_ref[l])                      # (S, D) f32
        normed_h = jnp.broadcast_to(normed.astype(jnp.bfloat16)[None],
                                    (N_HEADS, S, D_MODEL))    # (H, S, D) bf16
        # Head-batched fused QKV projection (one einsum; f32 accumulation).
        qkv = jnp.einsum('hsd,hde->hse', normed_h, wqkv_ref[l],
                         preferred_element_type=jnp.float32)  # (H, S, 3*Dkv) f32
        q = qkv[:, :, :D_KV].astype(jnp.bfloat16)             # (H, S, Dkv)
        k = qkv[:, :, D_KV:2 * D_KV].astype(jnp.bfloat16)
        v = qkv[:, :, 2 * D_KV:].astype(jnp.bfloat16)

        # T5 does NOT scale scores by 1/sqrt(d_kv).  All heads in one batched einsum.
        scores = jnp.einsum('hqd,hkd->hqk', q, k,
                            preferred_element_type=jnp.float32) + bias    # (H, S, S) f32
        scores = scores - jnp.max(scores, axis=-1, keepdims=True)
        p = jnp.exp(scores)
        p = p * pl.reciprocal(jnp.sum(p, axis=-1, keepdims=True), approx=True)

        ctx = jnp.einsum('hqk,hkd->hqd', p.astype(jnp.bfloat16), v,
                         preferred_element_type=jnp.float32)              # (H, S, Dkv) f32
        # concat(heads) @ Wo  ==  sum_h ctx_h @ Wo_h : one batched einsum + leading reduce.
        attn = jnp.einsum('hsd,hde->hse', ctx.astype(jnp.bfloat16), wo_ref[l],
                          preferred_element_type=jnp.float32)             # (H, S, D) f32
        x = x + jnp.sum(attn, axis=0)

        # ---- feed-forward sublayer (ReLU) ----------------------------------
        normed2 = _rmsnorm(x, ln2_ref[l]).astype(jnp.bfloat16)
        hdn = jnp.maximum(
            jnp.dot(normed2, wi_ref[l], preferred_element_type=jnp.float32), 0.0)
        x = x + jnp.dot(hdn.astype(jnp.bfloat16), wo2_ref[l],
                        preferred_element_type=jnp.float32)

    # ---- final RMSNorm + num_feature slice (lane-dense (nf, D) store) ----
    x = _rmsnorm(x, fln_ref[...])                             # (S, D)
    out_ref[...] = x[:nf, :].reshape(1, nf, D_MODEL)          # permute(0,2,1) done in wrapper


# ----------------------------------------------------------------------------
# pallas_call wrapper
# ----------------------------------------------------------------------------
def t5_encoder_pallas(x, pos_bias, att_mask3, ln1, wqkv_h, wo_h, ln2, wi, wo2,
                      final_ln_w, num_feature):
    B, S, _ = x.shape

    def bcast(a):
        # Full-array block with a constant index_map: DMA'd once, reused every grid step.
        return pl.BlockSpec(a.shape, lambda b, _n=a.ndim: (0,) * _n)

    kernel = functools.partial(t5_encoder_kernel, S=S, nf=num_feature)
    return pl.pallas_call(
        kernel,
        out_shape=jax.ShapeDtypeStruct((B, num_feature, D_MODEL), jnp.float32),
        grid=(B,),                                            # batch-parallel grid axis
        in_specs=[
            pl.BlockSpec((1, S, D_MODEL), lambda b: (b, 0, 0)),   # x
            bcast(pos_bias),                                      # (H, S, S)
            pl.BlockSpec((1, 1, S), lambda b: (b, 0, 0)),         # mask (B, 1, S)
            bcast(ln1), bcast(wqkv_h), bcast(wo_h),
            bcast(ln2), bcast(wi), bcast(wo2), bcast(final_ln_w),
        ],
        out_specs=pl.BlockSpec((1, num_feature, D_MODEL), lambda b: (b, 0, 0)),
        compiler_params=pltpu.CompilerParams(
            dimension_semantics=("parallel",)),               # both TCs on v7x
    )(x, pos_bias, att_mask3, ln1, wqkv_h, wo_h, ln2, wi, wo2, final_ln_w)


# ----------------------------------------------------------------------------
# Glue: embedding lookup, relative position bias, final permute (all jit'ed)
# ----------------------------------------------------------------------------
def _relative_position_bucket(rel_pos, num_buckets=NUM_BUCKETS, max_distance=MAX_DIST):
    # bidirectional bucketing (T5 encoder)
    nb = num_buckets // 2
    buckets = (rel_pos > 0).astype(jnp.int32) * nb
    n = jnp.abs(rel_pos)
    max_exact = nb // 2
    is_small = n < max_exact
    val_large = max_exact + (
        jnp.log(jnp.maximum(n, 1).astype(jnp.float32) / max_exact)
        / math.log(max_distance / max_exact) * (nb - max_exact)
    ).astype(jnp.int32)
    val_large = jnp.minimum(val_large, nb - 1)
    return buckets + jnp.where(is_small, n, val_large)


def _compute_position_bias(rel_table, S):
    ctx = jnp.arange(S)[:, None]
    mem = jnp.arange(S)[None, :]
    buckets = _relative_position_bucket(mem - ctx)       # (S, S)
    bias = rel_table[buckets]                            # (S, S, H)
    return jnp.transpose(bias, (2, 0, 1))                # (H, S, S) shared across batch/layers


@functools.partial(jax.jit, static_argnames=("num_feature",))
def t5_encoder_forward(input_ids, att_mask, embed, rel_table, stacked_params,
                       final_ln_w, num_feature):
    # TODO(synk): the PyTorch forward first Bert-decodes and T5-re-tokenizes the batch;
    # string tokenization has no Pallas equivalent, so T5 token ids/mask are taken directly.
    B, S = input_ids.shape
    x = embed[input_ids].astype(jnp.float32)              # (B, S, D)
    pos_bias = _compute_position_bias(rel_table, S)       # (H, S, S)
    mask3 = att_mask.astype(jnp.float32).reshape(B, 1, S)
    ln1, wqkv_h, wo_h, ln2, wi, wo2 = stacked_params
    out = t5_encoder_pallas(x, pos_bias, mask3,
                            ln1, wqkv_h, wo_h, ln2, wi, wo2, final_ln_w, num_feature)
    # last_hidden_state[:, :num_feature, :].permute(0, 2, 1) -> tiny transpose, done in XLA.
    return jnp.transpose(out, (0, 2, 1))                  # (B, D, num_feature)


# ----------------------------------------------------------------------------
# Deterministic parameter init + run
# ----------------------------------------------------------------------------
if __name__ == "__main__":
    B, S = 2, 8

    key = jax.random.PRNGKey(0)
    k_ids, k_emb, k_rel, *k_layers = jax.random.split(key, 3 + N_LAYERS)

    input_ids = jax.random.randint(k_ids, (B, S), 0, VOCAB, dtype=jnp.int32)
    att_mask = jnp.ones((B, S), dtype=jnp.float32).at[1, 6:].set(0.0)  # some padding

    embed = 0.05 * jax.random.normal(k_emb, (VOCAB, D_MODEL), dtype=jnp.float32)
    rel_table = 0.05 * jax.random.normal(k_rel, (NUM_BUCKETS, N_HEADS), dtype=jnp.float32)

    ln1_l, wqkv_l, wo_l, ln2_l, wi_l, wo2_l = [], [], [], [], [], []
    for kl in k_layers:
        ks = jax.random.split(kl, 6)
        wq = 0.05 * jax.random.normal(ks[0], (D_MODEL, N_HEADS * D_KV), jnp.float32)
        wk = 0.05 * jax.random.normal(ks[1], (D_MODEL, N_HEADS * D_KV), jnp.float32)
        wv = 0.05 * jax.random.normal(ks[2], (D_MODEL, N_HEADS * D_KV), jnp.float32)
        wo = 0.05 * jax.random.normal(ks[3], (N_HEADS * D_KV, D_MODEL), jnp.float32)
        wi = 0.05 * jax.random.normal(ks[4], (D_MODEL, D_FF), jnp.float32)
        wo2 = 0.05 * jax.random.normal(ks[5], (D_FF, D_MODEL), jnp.float32)

        # Head-major layouts so the kernel's head-batched einsums need no in-kernel relayout:
        #   wqkv_h[h] = [Wq_h | Wk_h | Wv_h]  (D, 3*Dkv);   wo_h[h] = Wo rows of head h.
        wq_h = jnp.transpose(wq.reshape(D_MODEL, N_HEADS, D_KV), (1, 0, 2))   # (H, D, Dkv)
        wk_h = jnp.transpose(wk.reshape(D_MODEL, N_HEADS, D_KV), (1, 0, 2))
        wv_h = jnp.transpose(wv.reshape(D_MODEL, N_HEADS, D_KV), (1, 0, 2))
        wqkv_l.append(jnp.concatenate([wq_h, wk_h, wv_h], axis=-1))           # (H, D, 3*Dkv)
        wo_l.append(wo.reshape(N_HEADS, D_KV, D_MODEL))                       # (H, Dkv, D)

        ln1_l.append(jnp.ones((1, D_MODEL), jnp.float32))
        ln2_l.append(jnp.ones((1, D_MODEL), jnp.float32))
        wi_l.append(wi)
        wo2_l.append(wo2)

    # Stack over layers; MXU-side weights shipped as bf16 (f32 accumulation in-kernel).
    stacked = (
        jnp.stack(ln1_l),                                    # (L, 1, D)          f32
        jnp.stack(wqkv_l).astype(jnp.bfloat16),              # (L, H, D, 3*Dkv)   bf16
        jnp.stack(wo_l).astype(jnp.bfloat16),                # (L, H, Dkv, D)     bf16
        jnp.stack(ln2_l),                                    # (L, 1, D)          f32
        jnp.stack(wi_l).astype(jnp.bfloat16),                # (L, D, F)          bf16
        jnp.stack(wo2_l).astype(jnp.bfloat16),               # (L, F, D)          bf16
    )
    final_ln_w = jnp.ones((1, D_MODEL), jnp.float32)

    out = t5_encoder_forward(input_ids, att_mask, embed, rel_table,
                             stacked, final_ln_w, num_feature=NUM_FEATURE)
    out = jax.block_until_ready(out)
    assert out.shape == (B, D_MODEL, NUM_FEATURE), out.shape
    assert bool(jnp.all(jnp.isfinite(out)))
    print("KERNEL_OK")
</pallas_src>

<mosaic_0001>
module attributes {stable_mosaic.version = 11 : i64} {
  func.func @t5_encoder_kernel(%arg0: i32, %arg1: memref<1x8x32xf32, #tpu.memory_space<vmem>>, %arg2: memref<4x8x8xf32, #tpu.memory_space<vmem>>, %arg3: memref<1x1x8xf32, #tpu.memory_space<vmem>>, %arg4: memref<2x1x32xf32, #tpu.memory_space<vmem>>, %arg5: memref<2x4x32x24xbf16, #tpu.memory_space<vmem>>, %arg6: memref<2x4x8x32xbf16, #tpu.memory_space<vmem>>, %arg7: memref<2x1x32xf32, #tpu.memory_space<vmem>>, %arg8: memref<2x32x64xbf16, #tpu.memory_space<vmem>>, %arg9: memref<2x64x32xbf16, #tpu.memory_space<vmem>>, %arg10: memref<1x32xf32, #tpu.memory_space<vmem>>, %arg11: memref<1x4x32xf32, #tpu.memory_space<vmem>>) attributes {dimension_semantics = [#tpu.dimension_semantics<parallel>], iteration_bounds = array<i64: 2>, scalar_prefetch = 0 : i64, scratch_operands = 0 : i64, tpu.core_type = #tpu.core_type<tc>, window_params = [{transform_indices = @transform_0, window_bounds = array<i64: 1, 8, 32>}, {pipeline_mode = #tpu.pipeline_mode<synchronous>, transform_indices = @transform_1, window_bounds = array<i64: 4, 8, 8>}, {transform_indices = @transform_2, window_bounds = array<i64: 1, 1, 8>}, {pipeline_mode = #tpu.pipeline_mode<synchronous>, transform_indices = @transform_3, window_bounds = array<i64: 2, 1, 32>}, {pipeline_mode = #tpu.pipeline_mode<synchronous>, transform_indices = @transform_4, window_bounds = array<i64: 2, 4, 32, 24>}, {pipeline_mode = #tpu.pipeline_mode<synchronous>, transform_indices = @transform_5, window_bounds = array<i64: 2, 4, 8, 32>}, {pipeline_mode = #tpu.pipeline_mode<synchronous>, transform_indices = @transform_6, window_bounds = array<i64: 2, 1, 32>}, {pipeline_mode = #tpu.pipeline_mode<synchronous>, transform_indices = @transform_7, window_bounds = array<i64: 2, 32, 64>}, {pipeline_mode = #tpu.pipeline_mode<synchronous>, transform_indices = @transform_8, window_bounds = array<i64: 2, 64, 32>}, {pipeline_mode = #tpu.pipeline_mode<synchronous>, transform_indices = @transform_9, window_bounds = array<i64: 1, 32>}, {transform_indices = @transform_10, window_bounds = array<i64: 1, 4, 32>}]} {
    %c0 = arith.constant 0 : index
    %c0_0 = arith.constant 0 : index
    %c0_1 = arith.constant 0 : index
    %0 = vector.load %arg1[%c0, %c0_0, %c0_1] : memref<1x8x32xf32, #tpu.memory_space<vmem>>, vector<1x8x32xf32>
    %1 = vector.shape_cast %0 : vector<1x8x32xf32> to vector<8x32xf32>
    %c0_2 = arith.constant 0 : index
    %c0_3 = arith.constant 0 : index
    %c0_4 = arith.constant 0 : index
    %2 = vector.load %arg3[%c0_2, %c0_3, %c0_4] : memref<1x1x8xf32, #tpu.memory_space<vmem>>, vector<1x1x8xf32>
    %cst = arith.constant 1.000000e+00 : f32
    %3 = vector.broadcast %cst : f32 to vector<1x1x8xf32>
    %4 = arith.subf %3, %2 : vector<1x1x8xf32>
    %cst_5 = arith.constant -1.000000e+09 : f32
    %5 = vector.broadcast %cst_5 : f32 to vector<1x1x8xf32>
    %6 = arith.mulf %4, %5 : vector<1x1x8xf32>
    %c0_6 = arith.constant 0 : index
    %c0_7 = arith.constant 0 : index
    %c0_8 = arith.constant 0 : index
    %7 = vector.load %arg2[%c0_6, %c0_7, %c0_8] : memref<4x8x8xf32, #tpu.memory_space<vmem>>, vector<4x8x8xf32>
    %8 = vector.broadcast %6 : vector<1x1x8xf32> to vector<4x8x8xf32>
    %9 = arith.addf %7, %8 : vector<4x8x8xf32>
    %c0_9 = arith.constant 0 : index
    %c0_10 = arith.constant 0 : index
    %c0_11 = arith.constant 0 : index
    %10 = vector.load %arg4[%c0_9, %c0_10, %c0_11] : memref<2x1x32xf32, #tpu.memory_space<vmem>>, vector<1x1x32xf32>
    %11 = vector.shape_cast %10 : vector<1x1x32xf32> to vector<1x32xf32>
    %12 = arith.mulf %1, %1 : vector<8x32xf32>
    %cst_12 = arith.constant dense<0.000000e+00> : vector<8xf32>
    %13 = vector.multi_reduction <add>, %12, %cst_12 [1] : vector<8x32xf32> to vector<8xf32>
    %14 = vector.shape_cast %13 : vector<8xf32> to vector<8x1xf32>
    %cst_13 = arith.constant 3.200000e+01 : f32
    %15 = vector.broadcast %cst_13 : f32 to vector<8x1xf32>
    %16 = arith.divf %14, %15 : vector<8x1xf32>
    %cst_14 = arith.constant 9.99999997E-7 : f32
    %17 = vector.broadcast %cst_14 : f32 to vector<8x1xf32>
    %18 = arith.addf %16, %17 : vector<8x1xf32>
    %19 = math.rsqrt %18 : vector<8x1xf32>
    %20 = vector.broadcast %19 : vector<8x1xf32> to vector<8x32xf32>
    %21 = arith.mulf %1, %20 : vector<8x32xf32>
    %22 = vector.broadcast %11 : vector<1x32xf32> to vector<8x32xf32>
    %23 = arith.mulf %21, %22 : vector<8x32xf32>
    %24 = arith.truncf %23 : vector<8x32xf32> to vector<8x32xbf16>
    %25 = vector.shape_cast %24 : vector<8x32xbf16> to vector<1x8x32xbf16>
    %26 = vector.shape_cast %25 : vector<1x8x32xbf16> to vector<1x8x32xbf16>
    %27 = vector.broadcast %26 : vector<1x8x32xbf16> to vector<4x8x32xbf16>
    %c0_15 = arith.constant 0 : index
    %c0_16 = arith.constant 0 : index
    %c0_17 = arith.constant 0 : index
    %c0_18 = arith.constant 0 : index
    %28 = vector.load %arg5[%c0_15, %c0_16, %c0_17, %c0_18] : memref<2x4x32x24xbf16, #tpu.memory_space<vmem>>, vector<1x4x32x24xbf16>
    %29 = vector.shape_cast %28 : vector<1x4x32x24xbf16> to vector<4x32x24xbf16>
    "tpu.trace_start"() <{level = 10 : i32, message = "hsd,hde->hse"}> : () -> ()
    %cst_19 = arith.constant dense<0.000000e+00> : vector<4x8x24xf32>
    %30 = tpu.matmul %27, %29, %cst_19 {dimension_numbers = #tpu.dot_dimension_numbers<[2], [1], [1], [2], [0, 0, 0, 1, 1, 2], [0], [0]>} : vector<4x8x32xbf16>, vector<4x32x24xbf16>, vector<4x8x24xf32> -> vector<4x8x24xf32>
    "tpu.trace_stop"() : () -> ()
    %31 = vector.extract_strided_slice %30 {offsets = [0, 0, 0], sizes = [4, 8, 8], strides = [1, 1, 1]} : vector<4x8x24xf32> to vector<4x8x8xf32>
    %32 = arith.truncf %31 : vector<4x8x8xf32> to vector<4x8x8xbf16>
    %33 = vector.extract_strided_slice %30 {offsets = [0, 0, 8], sizes = [4, 8, 8], strides = [1, 1, 1]} : vector<4x8x24xf32> to vector<4x8x8xf32>
    %34 = arith.truncf %33 : vector<4x8x8xf32> to vector<4x8x8xbf16>
    %35 = vector.extract_strided_slice %30 {offsets = [0, 0, 16], sizes = [4, 8, 8], strides = [1, 1, 1]} : vector<4x8x24xf32> to vector<4x8x8xf32>
    %36 = arith.truncf %35 : vector<4x8x8xf32> to vector<4x8x8xbf16>
    "tpu.trace_start"() <{level = 10 : i32, message = "hqd,hkd->hqk"}> : () -> ()
    %cst_20 = arith.constant dense<0.000000e+00> : vector<4x8x8xf32>
    %37 = tpu.matmul %32, %34, %cst_20 {dimension_numbers = #tpu.dot_dimension_numbers<[2], [2], [1], [1], [0, 0, 0, 1, 1, 1], [0], [0]>} : vector<4x8x8xbf16>, vector<4x8x8xbf16>, vector<4x8x8xf32> -> vector<4x8x8xf32>
    "tpu.trace_stop"() : () -> ()
    %38 = arith.addf %37, %9 : vector<4x8x8xf32>
    %cst_21 = arith.constant dense<0xFF800000> : vector<4x8xf32>
    %39 = vector.multi_reduction <maximumf>, %38, %cst_21 [2] : vector<4x8x8xf32> to vector<4x8xf32>
    %40 = vector.shape_cast %39 : vector<4x8xf32> to vector<4x8x1xf32>
    %41 = vector.broadcast %40 : vector<4x8x1xf32> to vector<4x8x8xf32>
    %42 = arith.subf %38, %41 : vector<4x8x8xf32>
    %43 = math.exp %42 : vector<4x8x8xf32>
    %cst_22 = arith.constant dense<0.000000e+00> : vector<4x8xf32>
    %44 = vector.multi_reduction <add>, %43, %cst_22 [2] : vector<4x8x8xf32> to vector<4x8xf32>
    %45 = vector.shape_cast %44 : vector<4x8xf32> to vector<4x8x1xf32>
    %46 = tpu.reciprocal %45 {approx = true} : vector<4x8x1xf32> -> vector<4x8x1xf32>
    %47 = vector.broadcast %46 : vector<4x8x1xf32> to vector<4x8x8xf32>
    %48 = arith.mulf %43, %47 : vector<4x8x8xf32>
    %49 = arith.truncf %48 : vector<4x8x8xf32> to vector<4x8x8xbf16>
    "tpu.trace_start"() <{level = 10 : i32, message = "hqk,hkd->hqd"}> : () -> ()
    %cst_23 = arith.constant dense<0.000000e+00> : vector<4x8x8xf32>
    %50 = tpu.matmul %49, %36, %cst_23 {dimension_numbers = #tpu.dot_dimension_numbers<[2], [1], [1], [2], [0, 0, 0, 1, 1, 2], [0], [0]>} : vector<4x8x8xbf16>, vector<4x8x8xbf16>, vector<4x8x8xf32> -> vector<4x8x8xf32>
    "tpu.trace_stop"() : () -> ()
    %51 = arith.truncf %50 : vector<4x8x8xf32> to vector<4x8x8xbf16>
    %c0_24 = arith.constant 0 : index
    %c0_25 = arith.constant 0 : index
    %c0_26 = arith.constant 0 : index
    %c0_27 = arith.constant 0 : index
    %52 = vector.load %arg6[%c0_24, %c0_25, %c0_26, %c0_27] : memref<2x4x8x32xbf16, #tpu.memory_space<vmem>>, vector<1x4x8x32xbf16>
    %53 = vector.shape_cast %52 : vector<1x4x8x32xbf16> to vector<4x8x32xbf16>
    "tpu.trace_start"() <{level = 10 : i32, message = "hsd,hde->hse"}> : () -> ()
    %cst_28 = arith.constant dense<0.000000e+00> : vector<4x8x32xf32>
    %54 = tpu.matmul %51, %53, %cst_28 {dimension_numbers = #tpu.dot_dimension_numbers<[2], [1], [1], [2], [0, 0, 0, 1, 1, 2], [0], [0]>} : vector<4x8x8xbf16>, vector<4x8x32xbf16>, vector<4x8x32xf32> -> vector<4x8x32xf32>
    "tpu.trace_stop"() : () -> ()
    %cst_29 = arith.constant dense<0.000000e+00> : vector<8x32xf32>
    %55 = vector.multi_reduction <add>, %54, %cst_29 [0] : vector<4x8x32xf32> to vector<8x32xf32>
    %56 = arith.addf %1, %55 : vector<8x32xf32>
    %c0_30 = arith.constant 0 : index
    %c0_31 = arith.constant 0 : index
    %c0_32 = arith.constant 0 : index
    %57 = vector.load %arg7[%c0_30, %c0_31, %c0_32] : memref<2x1x32xf32, #tpu.memory_space<vmem>>, vector<1x1x32xf32>
    %58 = vector.shape_cast %57 : vector<1x1x32xf32> to vector<1x32xf32>
    %59 = arith.mulf %56, %56 : vector<8x32xf32>
    %cst_33 = arith.constant dense<0.000000e+00> : vector<8xf32>
    %60 = vector.multi_reduction <add>, %59, %cst_33 [1] : vector<8x32xf32> to vector<8xf32>
    %61 = vector.shape_cast %60 : vector<8xf32> to vector<8x1xf32>
    %cst_34 = arith.constant 3.200000e+01 : f32
    %62 = vector.broadcast %cst_34 : f32 to vector<8x1xf32>
    %63 = arith.divf %61, %62 : vector<8x1xf32>
    %cst_35 = arith.constant 9.99999997E-7 : f32
    %64 = vector.broadcast %cst_35 : f32 to vector<8x1xf32>
    %65 = arith.addf %63, %64 : vector<8x1xf32>
    %66 = math.rsqrt %65 : vector<8x1xf32>
    %67 = vector.broadcast %66 : vector<8x1xf32> to vector<8x32xf32>
    %68 = arith.mulf %56, %67 : vector<8x32xf32>
    %69 = vector.broadcast %58 : vector<1x32xf32> to vector<8x32xf32>
    %70 = arith.mulf %68, %69 : vector<8x32xf32>
    %71 = arith.truncf %70 : vector<8x32xf32> to vector<8x32xbf16>
    %c0_36 = arith.constant 0 : index
    %c0_37 = arith.constant 0 : index
    %c0_38 = arith.constant 0 : index
    %72 = vector.load %arg8[%c0_36, %c0_37, %c0_38] : memref<2x32x64xbf16, #tpu.memory_space<vmem>>, vector<1x32x64xbf16>
    %73 = vector.shape_cast %72 : vector<1x32x64xbf16> to vector<32x64xbf16>
    %cst_39 = arith.constant dense<0.000000e+00> : vector<8x64xf32>
    %74 = tpu.matmul %71, %73, %cst_39 {dimension_numbers = #tpu.dot_dimension_numbers<[1], [0], [0], [1], [0, 0, 1, 1], [], []>} : vector<8x32xbf16>, vector<32x64xbf16>, vector<8x64xf32> -> vector<8x64xf32>
    %cst_40 = arith.constant 0.000000e+00 : f32
    %75 = vector.broadcast %cst_40 : f32 to vector<8x64xf32>
    %76 = arith.maximumf %74, %75 : vector<8x64xf32>
    %77 = arith.truncf %76 : vector<8x64xf32> to vector<8x64xbf16>
    %c0_41 = arith.constant 0 : index
    %c0_42 = arith.constant 0 : index
    %c0_43 = arith.constant 0 : index
    %78 = vector.load %arg9[%c0_41, %c0_42, %c0_43] : memref<2x64x32xbf16, #tpu.memory_space<vmem>>, vector<1x64x32xbf16>
    %79 = vector.shape_cast %78 : vector<1x64x32xbf16> to vector<64x32xbf16>
    %cst_44 = arith.constant dense<0.000000e+00> : vector<8x32xf32>
    %80 = tpu.matmul %77, %79, %cst_44 {dimension_numbers = #tpu.dot_dimension_numbers<[1], [0], [0], [1], [0, 0, 1, 1], [], []>} : vector<8x64xbf16>, vector<64x32xbf16>, vector<8x32xf32> -> vector<8x32xf32>
    %81 = arith.addf %56, %80 : vector<8x32xf32>
    %c1 = arith.constant 1 : index
    %c0_45 = arith.constant 0 : index
    %c0_46 = arith.constant 0 : index
    %82 = vector.load %arg4[%c1, %c0_45, %c0_46] : memref<2x1x32xf32, #tpu.memory_space<vmem>>, vector<1x1x32xf32>
    %83 = vector.shape_cast %82 : vector<1x1x32xf32> to vector<1x32xf32>
    %84 = arith.mulf %81, %81 : vector<8x32xf32>
    %cst_47 = arith.constant dense<0.000000e+00> : vector<8xf32>
    %85 = vector.multi_reduction <add>, %84, %cst_47 [1] : vector<8x32xf32> to vector<8xf32>
    %86 = vector.shape_cast %85 : vector<8xf32> to vector<8x1xf32>
    %cst_48 = arith.constant 3.200000e+01 : f32
    %87 = vector.broadcast %cst_48 : f32 to vector<8x1xf32>
    %88 = arith.divf %86, %87 : vector<8x1xf32>
    %cst_49 = arith.constant 9.99999997E-7 : f32
    %89 = vector.broadcast %cst_49 : f32 to vector<8x1xf32>
    %90 = arith.addf %88, %89 : vector<8x1xf32>
    %91 = math.rsqrt %90 : vector<8x1xf32>
    %92 = vector.broadcast %91 : vector<8x1xf32> to vector<8x32xf32>
    %93 = arith.mulf %81, %92 : vector<8x32xf32>
    %94 = vector.broadcast %83 : vector<1x32xf32> to vector<8x32xf32>
    %95 = arith.mulf %93, %94 : vector<8x32xf32>
    %96 = arith.truncf %95 : vector<8x32xf32> to vector<8x32xbf16>
    %97 = vector.shape_cast %96 : vector<8x32xbf16> to vector<1x8x32xbf16>
    %98 = vector.shape_cast %97 : vector<1x8x32xbf16> to vector<1x8x32xbf16>
    %99 = vector.broadcast %98 : vector<1x8x32xbf16> to vector<4x8x32xbf16>
    %c1_50 = arith.constant 1 : index
    %c0_51 = arith.constant 0 : index
    %c0_52 = arith.constant 0 : index
    %c0_53 = arith.constant 0 : index
    %100 = vector.load %arg5[%c1_50, %c0_51, %c0_52, %c0_53] : memref<2x4x32x24xbf16, #tpu.memory_space<vmem>>, vector<1x4x32x24xbf16>
    %101 = vector.shape_cast %100 : vector<1x4x32x24xbf16> to vector<4x32x24xbf16>
    "tpu.trace_start"() <{level = 10 : i32, message = "hsd,hde->hse"}> : () -> ()
    %cst_54 = arith.constant dense<0.000000e+00> : vector<4x8x24xf32>
    %102 = tpu.matmul %99, %101, %cst_54 {dimension_numbers = #tpu.dot_dimension_numbers<[2], [1], [1], [2], [0, 0, 0, 1, 1, 2], [0], [0]>} : vector<4x8x32xbf16>, vector<4x32x24xbf16>, vector<4x8x24xf32> -> vector<4x8x24xf32>
    "tpu.trace_stop"() : () -> ()
    %103 = vector.extract_strided_slice %102 {offsets = [0, 0, 0], sizes = [4, 8, 8], strides = [1, 1, 1]} : vector<4x8x24xf32> to vector<4x8x8xf32>
    %104 = arith.truncf %103 : vector<4x8x8xf32> to vector<4x8x8xbf16>
    %105 = vector.extract_strided_slice %102 {offsets = [0, 0, 8], sizes = [4, 8, 8], strides = [1, 1, 1]} : vector<4x8x24xf32> to vector<4x8x8xf32>
    %106 = arith.truncf %105 : vector<4x8x8xf32> to vector<4x8x8xbf16>
    %107 = vector.extract_strided_slice %102 {offsets = [0, 0, 16], sizes = [4, 8, 8], strides = [1, 1, 1]} : vector<4x8x24xf32> to vector<4x8x8xf32>
    %108 = arith.truncf %107 : vector<4x8x8xf32> to vector<4x8x8xbf16>
    "tpu.trace_start"() <{level = 10 : i32, message = "hqd,hkd->hqk"}> : () -> ()
    %cst_55 = arith.constant dense<0.000000e+00> : vector<4x8x8xf32>
    %109 = tpu.matmul %104, %106, %cst_55 {dimension_numbers = #tpu.dot_dimension_numbers<[2], [2], [1], [1], [0, 0, 0, 1, 1, 1], [0], [0]>} : vector<4x8x8xbf16>, vector<4x8x8xbf16>, vector<4x8x8xf32> -> vector<4x8x8xf32>
    "tpu.trace_stop"() : () -> ()
    %110 = arith.addf %109, %9 : vector<4x8x8xf32>
    %cst_56 = arith.constant dense<0xFF800000> : vector<4x8xf32>
    %111 = vector.multi_reduction <maximumf>, %110, %cst_56 [2] : vector<4x8x8xf32> to vector<4x8xf32>
    %112 = vector.shape_cast %111 : vector<4x8xf32> to vector<4x8x1xf32>
    %113 = vector.broadcast %112 : vector<4x8x1xf32> to vector<4x8x8xf32>
    %114 = arith.subf %110, %113 : vector<4x8x8xf32>
    %115 = math.exp %114 : vector<4x8x8xf32>
    %cst_57 = arith.constant dense<0.000000e+00> : vector<4x8xf32>
    %116 = vector.multi_reduction <add>, %115, %cst_57 [2] : vector<4x8x8xf32> to vector<4x8xf32>
    %117 = vector.shape_cast %116 : vector<4x8xf32> to vector<4x8x1xf32>
    %118 = tpu.reciprocal %117 {approx = true} : vector<4x8x1xf32> -> vector<4x8x1xf32>
    %119 = vector.broadcast %118 : vector<4x8x1xf32> to vector<4x8x8xf32>
    %120 = arith.mulf %115, %119 : vector<4x8x8xf32>
    %121 = arith.truncf %120 : vector<4x8x8xf32> to vector<4x8x8xbf16>
    "tpu.trace_start"() <{level = 10 : i32, message = "hqk,hkd->hqd"}> : () -> ()
    %cst_58 = arith.constant dense<0.000000e+00> : vector<4x8x8xf32>
    %122 = tpu.matmul %121, %108, %cst_58 {dimension_numbers = #tpu.dot_dimension_numbers<[2], [1], [1], [2], [0, 0, 0, 1, 1, 2], [0], [0]>} : vector<4x8x8xbf16>, vector<4x8x8xbf16>, vector<4x8x8xf32> -> vector<4x8x8xf32>
    "tpu.trace_stop"() : () -> ()
    %123 = arith.truncf %122 : vector<4x8x8xf32> to vector<4x8x8xbf16>
    %c1_59 = arith.constant 1 : index
    %c0_60 = arith.constant 0 : index
    %c0_61 = arith.constant 0 : index
    %c0_62 = arith.constant 0 : index
    %124 = vector.load %arg6[%c1_59, %c0_60, %c0_61, %c0_62] : memref<2x4x8x32xbf16, #tpu.memory_space<vmem>>, vector<1x4x8x32xbf16>
    %125 = vector.shape_cast %124 : vector<1x4x8x32xbf16> to vector<4x8x32xbf16>
    "tpu.trace_start"() <{level = 10 : i32, message = "hsd,hde->hse"}> : () -> ()
    %cst_63 = arith.constant dense<0.000000e+00> : vector<4x8x32xf32>
    %126 = tpu.matmul %123, %125, %cst_63 {dimension_numbers = #tpu.dot_dimension_numbers<[2], [1], [1], [2], [0, 0, 0, 1, 1, 2], [0], [0]>} : vector<4x8x8xbf16>, vector<4x8x32xbf16>, vector<4x8x32xf32> -> vector<4x8x32xf32>
    "tpu.trace_stop"() : () -> ()
    %cst_64 = arith.constant dense<0.000000e+00> : vector<8x32xf32>
    %127 = vector.multi_reduction <add>, %126, %cst_64 [0] : vector<4x8x32xf32> to vector<8x32xf32>
    %128 = arith.addf %81, %127 : vector<8x32xf32>
    %c1_65 = arith.constant 1 : index
    %c0_66 = arith.constant 0 : index
    %c0_67 = arith.constant 0 : index
    %129 = vector.load %arg7[%c1_65, %c0_66, %c0_67] : memref<2x1x32xf32, #tpu.memory_space<vmem>>, vector<1x1x32xf32>
    %130 = vector.shape_cast %129 : vector<1x1x32xf32> to vector<1x32xf32>
    %131 = arith.mulf %128, %128 : vector<8x32xf32>
    %cst_68 = arith.constant dense<0.000000e+00> : vector<8xf32>
    %132 = vector.multi_reduction <add>, %131, %cst_68 [1] : vector<8x32xf32> to vector<8xf32>
    %133 = vector.shape_cast %132 : vector<8xf32> to vector<8x1xf32>
    %cst_69 = arith.constant 3.200000e+01 : f32
    %134 = vector.broadcast %cst_69 : f32 to vector<8x1xf32>
    %135 = arith.divf %133, %134 : vector<8x1xf32>
    %cst_70 = arith.constant 9.99999997E-7 : f32
    %136 = vector.broadcast %cst_70 : f32 to vector<8x1xf32>
    %137 = arith.addf %135, %136 : vector<8x1xf32>
    %138 = math.rsqrt %137 : vector<8x1xf32>
    %139 = vector.broadcast %138 : vector<8x1xf32> to vector<8x32xf32>
    %140 = arith.mulf %128, %139 : vector<8x32xf32>
    %141 = vector.broadcast %130 : vector<1x32xf32> to vector<8x32xf32>
    %142 = arith.mulf %140, %141 : vector<8x32xf32>
    %143 = arith.truncf %142 : vector<8x32xf32> to vector<8x32xbf16>
    %c1_71 = arith.constant 1 : index
    %c0_72 = arith.constant 0 : index
    %c0_73 = arith.constant 0 : index
    %144 = vector.load %arg8[%c1_71, %c0_72, %c0_73] : memref<2x32x64xbf16, #tpu.memory_space<vmem>>, vector<1x32x64xbf16>
    %145 = vector.shape_cast %144 : vector<1x32x64xbf16> to vector<32x64xbf16>
    %cst_74 = arith.constant dense<0.000000e+00> : vector<8x64xf32>
    %146 = tpu.matmul %143, %145, %cst_74 {dimension_numbers = #tpu.dot_dimension_numbers<[1], [0], [0], [1], [0, 0, 1, 1], [], []>} : vector<8x32xbf16>, vector<32x64xbf16>, vector<8x64xf32> -> vector<8x64xf32>
    %cst_75 = arith.constant 0.000000e+00 : f32
    %147 = vector.broadcast %cst_75 : f32 to vector<8x64xf32>
    %148 = arith.maximumf %146, %147 : vector<8x64xf32>
    %149 = arith.truncf %148 : vector<8x64xf32> to vector<8x64xbf16>
    %c1_76 = arith.constant 1 : index
    %c0_77 = arith.constant 0 : index
    %c0_78 = arith.constant 0 : index
    %150 = vector.load %arg9[%c1_76, %c0_77, %c0_78] : memref<2x64x32xbf16, #tpu.memory_space<vmem>>, vector<1x64x32xbf16>
    %151 = vector.shape_cast %150 : vector<1x64x32xbf16> to vector<64x32xbf16>
    %cst_79 = arith.constant dense<0.000000e+00> : vector<8x32xf32>
    %152 = tpu.matmul %149, %151, %cst_79 {dimension_numbers = #tpu.dot_dimension_numbers<[1], [0], [0], [1], [0, 0, 1, 1], [], []>} : vector<8x64xbf16>, vector<64x32xbf16>, vector<8x32xf32> -> vector<8x32xf32>
    %153 = arith.addf %128, %152 : vector<8x32xf32>
    %c0_80 = arith.constant 0 : index
    %c0_81 = arith.constant 0 : index
    %154 = vector.load %arg10[%c0_80, %c0_81] : memref<1x32xf32, #tpu.memory_space<vmem>>, vector<1x32xf32>
    %155 = arith.mulf %153, %153 : vector<8x32xf32>
    %cst_82 = arith.constant dense<0.000000e+00> : vector<8xf32>
    %156 = vector.multi_reduction <add>, %155, %cst_82 [1] : vector<8x32xf32> to vector<8xf32>
    %157 = vector.shape_cast %156 : vector<8xf32> to vector<8x1xf32>
    %cst_83 = arith.constant 3.200000e+01 : f32
    %158 = vector.broadcast %cst_83 : f32 to vector<8x1xf32>
    %159 = arith.divf %157, %158 : vector<8x1xf32>
    %cst_84 = arith.constant 9.99999997E-7 : f32
    %160 = vector.broadcast %cst_84 : f32 to vector<8x1xf32>
    %161 = arith.addf %159, %160 : vector<8x1xf32>
    %162 = math.rsqrt %161 : vector<8x1xf32>
    %163 = vector.broadcast %162 : vector<8x1xf32> to vector<8x32xf32>
    %164 = arith.mulf %153, %163 : vector<8x32xf32>
    %165 = vector.broadcast %154 : vector<1x32xf32> to vector<8x32xf32>
    %166 = arith.mulf %164, %165 : vector<8x32xf32>
    %167 = vector.extract_strided_slice %166 {offsets = [0, 0], sizes = [4, 32], strides = [1, 1]} : vector<8x32xf32> to vector<4x32xf32>
    %168 = vector.shape_cast %167 : vector<4x32xf32> to vector<1x4x32xf32>
    %c0_85 = arith.constant 0 : index
    %c0_86 = arith.constant 0 : index
    %c0_87 = arith.constant 0 : index
    %169 = vector.load %arg11[%c0_85, %c0_86, %c0_87] : memref<1x4x32xf32, #tpu.memory_space<vmem>>, vector<1x4x32xf32>
    tpu.vector_store %arg11[%c0_85, %c0_86, %c0_87], %168 {strides = array<i32>} : memref<1x4x32xf32, #tpu.memory_space<vmem>>, vector<1x4x32xf32>,
    return
  }
  func.func @transform_0(%arg0: i32) -> (i32, i32, i32) {
    %c0_i32 = arith.constant 0 : i32
    %c0_i32_0 = arith.constant 0 : i32
    %c0_i32_1 = arith.constant 0 : i32
    return %arg0, %c0_i32, %c0_i32_0 : i32, i32, i32
  }
  func.func @transform_1(%arg0: i32) -> (i32, i32, i32) {
    %c0_i32 = arith.constant 0 : i32
    %c0_i32_0 = arith.constant 0 : i32
    %c0_i32_1 = arith.constant 0 : i32
    %c0_i32_2 = arith.constant 0 : i32
    return %c0_i32, %c0_i32_0, %c0_i32_1 : i32, i32, i32
  }
  func.func @transform_2(%arg0: i32) -> (i32, i32, i32) {
    %c0_i32 = arith.constant 0 : i32
    %c0_i32_0 = arith.constant 0 : i32
    %c0_i32_1 = arith.constant 0 : i32
    return %arg0, %c0_i32, %c0_i32_0 : i32, i32, i32
  }
  func.func @transform_3(%arg0: i32) -> (i32, i32, i32) {
    %c0_i32 = arith.constant 0 : i32
    %c0_i32_0 = arith.constant 0 : i32
    %c0_i32_1 = arith.constant 0 : i32
    %c0_i32_2 = arith.constant 0 : i32
    return %c0_i32, %c0_i32_0, %c0_i32_1 : i32, i32, i32
  }
  func.func @transform_4(%arg0: i32) -> (i32, i32, i32, i32) {
    %c0_i32 = arith.constant 0 : i32
    %c0_i32_0 = arith.constant 0 : i32
    %c0_i32_1 = arith.constant 0 : i32
    %c0_i32_2 = arith.constant 0 : i32
    %c0_i32_3 = arith.constant 0 : i32
    return %c0_i32, %c0_i32_0, %c0_i32_1, %c0_i32_2 : i32, i32, i32, i32
  }
  func.func @transform_5(%arg0: i32) -> (i32, i32, i32, i32) {
    %c0_i32 = arith.constant 0 : i32
    %c0_i32_0 = arith.constant 0 : i32
    %c0_i32_1 = arith.constant 0 : i32
    %c0_i32_2 = arith.constant 0 : i32
    %c0_i32_3 = arith.constant 0 : i32
    return %c0_i32, %c0_i32_0, %c0_i32_1, %c0_i32_2 : i32, i32, i32, i32
  }
  func.func @transform_6(%arg0: i32) -> (i32, i32, i32) {
    %c0_i32 = arith.constant 0 : i32
    %c0_i32_0 = arith.constant 0 : i32
    %c0_i32_1 = arith.constant 0 : i32
    %c0_i32_2 = arith.constant 0 : i32
    return %c0_i32, %c0_i32_0, %c0_i32_1 : i32, i32, i32
  }
  func.func @transform_7(%arg0: i32) -> (i32, i32, i32) {
    %c0_i32 = arith.constant 0 : i32
    %c0_i32_0 = arith.constant 0 : i32
    %c0_i32_1 = arith.constant 0 : i32
    %c0_i32_2 = arith.constant 0 : i32
    return %c0_i32, %c0_i32_0, %c0_i32_1 : i32, i32, i32
  }
  func.func @transform_8(%arg0: i32) -> (i32, i32, i32) {
    %c0_i32 = arith.constant 0 : i32
    %c0_i32_0 = arith.constant 0 : i32
    %c0_i32_1 = arith.constant 0 : i32
    %c0_i32_2 = arith.constant 0 : i32
    return %c0_i32, %c0_i32_0, %c0_i32_1 : i32, i32, i32
  }
  func.func @transform_9(%arg0: i32) -> (i32, i32) {
    %c0_i32 = arith.constant 0 : i32
    %c0_i32_0 = arith.constant 0 : i32
    %c0_i32_1 = arith.constant 0 : i32
    return %c0_i32, %c0_i32_0 : i32, i32
  }
  func.func @transform_10(%arg0: i32) -> (i32, i32, i32) {
    %c0_i32 = arith.constant 0 : i32
    %c0_i32_0 = arith.constant 0 : i32
    %c0_i32_1 = arith.constant 0 : i32
    return %arg0, %c0_i32, %c0_i32_0 : i32, i32, i32
  }
}

</mosaic_0001>

<llo_original>
// kernel: t5_encoder_forward.1
$region0: #{t5_encoder_forward.1}
  #allocation0 [shape = 'u32[]', space=smem, size = 0x4, offset = 0x4, fixed_abs, tag = 'smem constant byte address 0x4 - core index']
  #allocation1 [shape = 'u32[144,128]{1,0:T(1,128)}', space=vmem, size = 0x12000, scoped, tag = 'internal scratch']
  %s0 = inlined_call_operand.vmem [shape: f32[2,8,32], index: 0, kind: input, shape index: {}]
  %s1 = inlined_call_operand.vmem [shape: f32[4,8,8], index: 1, kind: input, shape index: {}]
  %s2 = inlined_call_operand.vmem [shape: f32[2,1,8], index: 2, kind: input, shape index: {}]
  %s3 = inlined_call_operand.vmem [shape: f32[2,1,32], index: 3, kind: input, shape index: {}]
  %s4 = inlined_call_operand.vmem [shape: bf16[2,4,32,24], index: 4, kind: input, shape index: {}]
  %s5 = inlined_call_operand.vmem [shape: bf16[2,4,8,32], index: 5, kind: input, shape index: {}]
  %s6 = inlined_call_operand.vmem [shape: f32[2,1,32], index: 6, kind: input, shape index: {}]
  %s7 = inlined_call_operand.vmem [shape: bf16[2,32,64], index: 7, kind: input, shape index: {}]
  %s8 = inlined_call_operand.vmem [shape: bf16[2,64,32], index: 8, kind: input, shape index: {}]
  %s9 = inlined_call_operand.vmem [shape: f32[1,32], index: 9, kind: input, shape index: {}]
  %s10 = inlined_call_operand.hbm [shape: f32[2,4,32], index: 10, kind: output, shape index: {}]
  %s11 = sld [smem:[#allocation0]]
  $region73: #{t5_encoder_forward.1} parent=0
    _
  %s13 = ssub.s32 1, %s11
  %s14 = scalar_select 0, %s13, %s11
  $region1: #{t5_encoder_forward.1} parent=0
    #allocation2 [shape = 'u8[4096]{0}', space=vmem, size = 0x1000, scoped, tag = 'output window, operand 0']
    #allocation3 [shape = 's32[2]{0}', space=sflag, size = 0x8, scoped, tag = 'scoped memory for t5_encoder_forward.1']
    %15 = vsyncpa [#allocation3], 0
    %s16 = scalar_lea.sflag [#allocation3], 1
    %17 = vsyncpa %s16, 0
    loop: start=0, step=1, limit=4
    $region2: #{t5_encoder_forward.1} parent=1 // loop_pre_header
      _
    $region3: #{t5_encoder_forward.1} parent=1 // loop_header
      %s19 = sphi 0, %s23
      %p20 = scmp.ge.s32.totalorder %s19, 4
      %s29 = sphi 0, %s31
      %s32 = sphi 0, %s29
      %s33 = sphi 0, %s32
      %s49 = sphi 0, %s33
      %s53 = sphi 0, %s53
      %s55 = sphi 0, %s53
      %s56 = sphi 0, %s55
      %s70 = sphi 0, %s56
      %s76 = sphi 0, %s78
      %s79 = sphi 0, %s76
      %s80 = sphi 0, %s79
      %s96 = sphi 0, %s80
      %s100 = sphi 0, %s100
      %s102 = sphi 0, %s100
      %s103 = sphi 0, %s102
      %s117 = sphi 0, %s103
      %s121 = sphi 0, %s121
      %s123 = sphi 0, %s121
      %s124 = sphi 0, %s123
      %s138 = sphi 0, %s124
      %s142 = sphi 0, %s142
      %s144 = sphi 0, %s142
      %s145 = sphi 0, %s144
      %s159 = sphi 0, %s145
      %s163 = sphi 0, %s163
      %s165 = sphi 0, %s163
      %s166 = sphi 0, %s165
      %s180 = sphi 0, %s166
      %s184 = sphi 0, %s184
      %s186 = sphi 0, %s184
      %s187 = sphi 0, %s186
      %s201 = sphi 0, %s187
      %s205 = sphi 0, %s205
      %s207 = sphi 0, %s205
      %s208 = sphi 0, %s207
      %s222 = sphi 0, %s208
      %s226 = sphi 0, %s226
      %s228 = sphi 0, %s226
      %s229 = sphi 0, %s228
      %s243 = sphi 0, %s229
      %s249 = sphi 0, %s251
      %s252 = sphi 0, %s249
      %s253 = sphi 0, %s252
      %s269 = sphi 0, %s253
    $region4: #{t5_encoder_forward.1} parent=1 // loop_header_branch
      %22 = sbr.rel (%p20) target = $region8
    $region5: #{t5_encoder_forward.1} parent=1 // loop_body
      %s24 = ssub.s32 %s19, 1
      %s25 = ssub.s32 %s19, 2
      %s26 = sadd.s32 %s19, 1
      %s27 = ssub.s32 %s19, %s26
      %p28 = scmp.eq.s32.totalorder %s27, 0
      %s30 = sadd.s32 %s29, 1
      %s31 = scalar_select %p28, %s29, %s30
      %p34 = pneg %p28
      %p35 = scmp.eq.s32.totalorder %s19, 1
      %p36 = por %p34, %p35
      %p37 = scmp.ne.s32.totalorder %s29, %s32
      %p38 = scmp.eq.s32.totalorder %s19, 0
      %p39 = por %p37, %p38
      %p40 = scmp.ne.s32.totalorder %s29, %s32
      %p41 = scmp.eq.s32.totalorder %s24, 1
      %p42 = por %p40, %p41
      %p43 = scmp.ne.s32.totalorder %s32, %s33
      %p44 = scmp.eq.s32.totalorder %s24, 0
      %p45 = por %p43, %p44
      %p46 = scmp.ne.s32.totalorder %s32, %s33
      %p47 = scmp.eq.s32.totalorder %s25, 1
      %p48 = por %p46, %p47
      %p50 = scmp.ne.s32.totalorder %s33, %s49
      %p51 = scmp.eq.s32.totalorder %s25, 0
      %p52 = por %p50, %p51
      %s54 = sadd.s32 %s53, 1
      %p57 = scmp.eq.s32.totalorder %s19, 1
      %p58 = scmp.ne.s32.totalorder %s53, %s55
      %p59 = scmp.eq.s32.totalorder %s19, 0
      %p60 = por %p58, %p59
      %p61 = scmp.ne.s32.totalorder %s53, %s55
      %p62 = scmp.eq.s32.totalorder %s24, 1
      %p63 = por %p61, %p62
      %p64 = scmp.ne.s32.totalorder %s55, %s56
      %p65 = scmp.eq.s32.totalorder %s24, 0
      %p66 = por %p64, %p65
      %p67 = scmp.ne.s32.totalorder %s55, %s56
      %p68 = scmp.eq.s32.totalorder %s25, 1
      %p69 = por %p67, %p68
      %p71 = scmp.ne.s32.totalorder %s56, %s70
      %p72 = scmp.eq.s32.totalorder %s25, 0
      %p73 = por %p71, %p72
      %s74 = ssub.s32 %s19, %s26
      %p75 = scmp.eq.s32.totalorder %s74, 0
      %s77 = sadd.s32 %s76, 1
      %s78 = scalar_select %p75, %s76, %s77
      %p81 = pneg %p75
      %p82 = scmp.eq.s32.totalorder %s19, 1
      %p83 = por %p81, %p82
      %p84 = scmp.ne.s32.totalorder %s76, %s79
      %p85 = scmp.eq.s32.totalorder %s19, 0
      %p86 = por %p84, %p85
      %p87 = scmp.ne.s32.totalorder %s76, %s79
      %p88 = scmp.eq.s32.totalorder %s24, 1
      %p89 = por %p87, %p88
      %p90 = scmp.ne.s32.totalorder %s79, %s80
      %p91 = scmp.eq.s32.totalorder %s24, 0
      %p92 = por %p90, %p91
      %p93 = scmp.ne.s32.totalorder %s79, %s80
      %p94 = scmp.eq.s32.totalorder %s25, 1
      %p95 = por %p93, %p94
      %p97 = scmp.ne.s32.totalorder %s80, %s96
      %p98 = scmp.eq.s32.totalorder %s25, 0
      %p99 = por %p97, %p98
      %s101 = sadd.s32 %s100, 1
      %p104 = scmp.eq.s32.totalorder %s19, 1
      %p105 = scmp.ne.s32.totalorder %s100, %s102
      %p106 = scmp.eq.s32.totalorder %s19, 0
      %p107 = por %p105, %p106
      %p108 = scmp.ne.s32.totalorder %s100, %s102
      %p109 = scmp.eq.s32.totalorder %s24, 1
      %p110 = por %p108, %p109
      %p111 = scmp.ne.s32.totalorder %s102, %s103
      %p112 = scmp.eq.s32.totalorder %s24, 0
      %p113 = por %p111, %p112
      %p114 = scmp.ne.s32.totalorder %s102, %s103
      %p115 = scmp.eq.s32.totalorder %s25, 1
      %p116 = por %p114, %p115
      %p118 = scmp.ne.s32.totalorder %s103, %s117
      %p119 = scmp.eq.s32.totalorder %s25, 0
      %p120 = por %p118, %p119
      %s122 = sadd.s32 %s121, 1
      %p125 = scmp.eq.s32.totalorder %s19, 1
      %p126 = scmp.ne.s32.totalorder %s121, %s123
      %p127 = scmp.eq.s32.totalorder %s19, 0
      %p128 = por %p126, %p127
      %p129 = scmp.ne.s32.totalorder %s121, %s123
      %p130 = scmp.eq.s32.totalorder %s24, 1
      %p131 = por %p129, %p130
      %p132 = scmp.ne.s32.totalorder %s123, %s124
      %p133 = scmp.eq.s32.totalorder %s24, 0
      %p134 = por %p132, %p133
      %p135 = scmp.ne.s32.totalorder %s123, %s124
      %p136 = scmp.eq.s32.totalorder %s25, 1
      %p137 = por %p135, %p136
      %p139 = scmp.ne.s32.totalorder %s124, %s138
      %p140 = scmp.eq.s32.totalorder %s25, 0
      %p141 = por %p139, %p140
      %s143 = sadd.s32 %s142, 1
      %p146 = scmp.eq.s32.totalorder %s19, 1
      %p147 = scmp.ne.s32.totalorder %s142, %s144
      %p148 = scmp.eq.s32.totalorder %s19, 0
      %p149 = por %p147, %p148
      %p150 = scmp.ne.s32.totalorder %s142, %s144
      %p151 = scmp.eq.s32.totalorder %s24, 1
      %p152 = por %p150, %p151
      %p153 = scmp.ne.s32.totalorder %s144, %s145
      %p154 = scmp.eq.s32.totalorder %s24, 0
      %p155 = por %p153, %p154
      %p156 = scmp.ne.s32.totalorder %s144, %s145
      %p157 = scmp.eq.s32.totalorder %s25, 1
      %p158 = por %p156, %p157
      %p160 = scmp.ne.s32.totalorder %s145, %s159
      %p161 = scmp.eq.s32.totalorder %s25, 0
      %p162 = por %p160, %p161
      %s164 = sadd.s32 %s163, 1
      %p167 = scmp.eq.s32.totalorder %s19, 1
      %p168 = scmp.ne.s32.totalorder %s163, %s165
      %p169 = scmp.eq.s32.totalorder %s19, 0
      %p170 = por %p168, %p169
      %p171 = scmp.ne.s32.totalorder %s163, %s165
      %p172 = scmp.eq.s32.totalorder %s24, 1
      %p173 = por %p171, %p172
      %p174 = scmp.ne.s32.totalorder %s165, %s166
      %p175 = scmp.eq.s32.totalorder %s24, 0
      %p176 = por %p174, %p175
      %p177 = scmp.ne.s32.totalorder %s165, %s166
      %p178 = scmp.eq.s32.totalorder %s25, 1
      %p179 = por %p177, %p178
      %p181 = scmp.ne.s32.totalorder %s166, %s180
      %p182 = scmp.eq.s32.totalorder %s25, 0
      %p183 = por %p181, %p182
      %s185 = sadd.s32 %s184, 1
      %p188 = scmp.eq.s32.totalorder %s19, 1
      %p189 = scmp.ne.s32.totalorder %s184, %s186
      %p190 = scmp.eq.s32.totalorder %s19, 0
      %p191 = por %p189, %p190
      %p192 = scmp.ne.s32.totalorder %s184, %s186
      %p193 = scmp.eq.s32.totalorder %s24, 1
      %p194 = por %p192, %p193
      %p195 = scmp.ne.s32.totalorder %s186, %s187
      %p196 = scmp.eq.s32.totalorder %s24, 0
      %p197 = por %p195, %p196
      %p198 = scmp.ne.s32.totalorder %s186, %s187
      %p199 = scmp.eq.s32.totalorder %s25, 1
      %p200 = por %p198, %p199
      %p202 = scmp.ne.s32.totalorder %s187, %s201
      %p203 = scmp.eq.s32.totalorder %s25, 0
      %p204 = por %p202, %p203
      %s206 = sadd.s32 %s205, 1
      %p209 = scmp.eq.s32.totalorder %s19, 1
      %p210 = scmp.ne.s32.totalorder %s205, %s207
      %p211 = scmp.eq.s32.totalorder %s19, 0
      %p212 = por %p210, %p211
      %p213 = scmp.ne.s32.totalorder %s205, %s207
      %p214 = scmp.eq.s32.totalorder %s24, 1
      %p215 = por %p213, %p214
      %p216 = scmp.ne.s32.totalorder %s207, %s208
      %p217 = scmp.eq.s32.totalorder %s24, 0
      %p218 = por %p216, %p217
      %p219 = scmp.ne.s32.totalorder %s207, %s208
      %p220 = scmp.eq.s32.totalorder %s25, 1
      %p221 = por %p219, %p220
      %p223 = scmp.ne.s32.totalorder %s208, %s222
      %p224 = scmp.eq.s32.totalorder %s25, 0
      %p225 = por %p223, %p224
      %s227 = sadd.s32 %s226, 1
      %p230 = scmp.eq.s32.totalorder %s19, 1
      %p231 = scmp.ne.s32.totalorder %s226, %s228
      %p232 = scmp.eq.s32.totalorder %s19, 0
      %p233 = por %p231, %p232
      %p234 = scmp.ne.s32.totalorder %s226, %s228
      %p235 = scmp.eq.s32.totalorder %s24, 1
      %p236 = por %p234, %p235
      %p237 = scmp.ne.s32.totalorder %s228, %s229
      %p238 = scmp.eq.s32.totalorder %s24, 0
      %p239 = por %p237, %p238
      %p240 = scmp.ne.s32.totalorder %s228, %s229
      %p241 = scmp.eq.s32.totalorder %s25, 1
      %p242 = por %p240, %p241
      %p244 = scmp.ne.s32.totalorder %s229, %s243
      %p245 = scmp.eq.s32.totalorder %s25, 0
      %p246 = por %p244, %p245
      %s247 = ssub.s32 %s19, %s26
      %p248 = scmp.eq.s32.totalorder %s247, 0
      %s250 = sadd.s32 %s249, 1
      %s251 = scalar_select %p248, %s249, %s250
      %p254 = pneg %p248
      %p255 = scmp.eq.s32.totalorder %s19, 1
      %p256 = por %p254, %p255
      %p257 = scmp.ne.s32.totalorder %s249, %s252
      %p258 = scmp.eq.s32.totalorder %s19, 0
      %p259 = por %p257, %p258
      %p260 = scmp.ne.s32.totalorder %s249, %s252
      %p261 = scmp.eq.s32.totalorder %s24, 1
      %p262 = por %p260, %p261
      %p263 = scmp.ne.s32.totalorder %s252, %s253
      %p264 = scmp.eq.s32.totalorder %s24, 0
      %p265 = por %p263, %p264
      %p266 = scmp.ne.s32.totalorder %s252, %s253
      %p267 = scmp.eq.s32.totalorder %s25, 1
      %p268 = por %p266, %p267
      %p270 = scmp.ne.s32.totalorder %s253, %s269
      %p271 = scmp.eq.s32.totalorder %s25, 0
      %p272 = por %p270, %p271
      %p273 = scmp.le.s32.totalorder 1, %s19
      %p274 = scmp.lt.s32.totalorder %s19, 3
      %p275 = pnand %p273, %p274
      %p276 = pneg %p275
      // Predicated region
      $region9: #{t5_encoder_forward.1} parent=5 // pred_check
        _
      $region10: #{t5_encoder_forward.1} parent=5 // pred_check_branch
        %278 = sbr.rel (%p275) target = $region12
      $region11: #{t5_encoder_forward.1} parent=5 // pred_region
        %s279 = ssub.s32 %s19, 1
        // Predicated region
        $region13: #{t5_encoder_forward.1} parent=11 // pred_check
          %p280 = pneg %p66
        $region14: #{t5_encoder_forward.1} parent=11 // pred_check_branch
          %282 = sbr.rel (%p280) target = $region16
        $region15: #{t5_encoder_forward.1} parent=11 // pred_region
          _
        $region16: #{t5_encoder_forward.1} parent=11 // pred_fallthru
          _
        // Predicated region
        $region17: #{t5_encoder_forward.1} parent=11 // pred_check
          %p283 = pneg %p113
        $region18: #{t5_encoder_forward.1} parent=11 // pred_check_branch
          %285 = sbr.rel (%p283) target = $region20
        $region19: #{t5_encoder_forward.1} parent=11 // pred_region
          _
        $region20: #{t5_encoder_forward.1} parent=11 // pred_fallthru
          _
        // Predicated region
        $region21: #{t5_encoder_forward.1} parent=11 // pred_check
          %p286 = pneg %p134
        $region22: #{t5_encoder_forward.1} parent=11 // pred_check_branch
          %288 = sbr.rel (%p286) target = $region24
        $region23: #{t5_encoder_forward.1} parent=11 // pred_region
          _
        $region24: #{t5_encoder_forward.1} parent=11 // pred_fallthru
          _
        // Predicated region
        $region25: #{t5_encoder_forward.1} parent=11 // pred_check
          %p289 = pneg %p155
        $region26: #{t5_encoder_forward.1} parent=11 // pred_check_branch
          %291 = sbr.rel (%p289) target = $region28
        $region27: #{t5_encoder_forward.1} parent=11 // pred_region
          _
        $region28: #{t5_encoder_forward.1} parent=11 // pred_fallthru
          _
        // Predicated region
        $region29: #{t5_encoder_forward.1} parent=11 // pred_check
          %p292 = pneg %p176
        $region30: #{t5_encoder_forward.1} parent=11 // pred_check_branch
          %294 = sbr.rel (%p292) target = $region32
        $region31: #{t5_encoder_forward.1} parent=11 // pred_region
          _
        $region32: #{t5_encoder_forward.1} parent=11 // pred_fallthru
          _
        // Predicated region
        $region33: #{t5_encoder_forward.1} parent=11 // pred_check
          %p295 = pneg %p197
        $region34: #{t5_encoder_forward.1} parent=11 // pred_check_branch
          %297 = sbr.rel (%p295) target = $region36
        $region35: #{t5_encoder_forward.1} parent=11 // pred_region
          _
        $region36: #{t5_encoder_forward.1} parent=11 // pred_fallthru
          _
        // Predicated region
        $region37: #{t5_encoder_forward.1} parent=11 // pred_check
          %p298 = pneg %p218
        $region38: #{t5_encoder_forward.1} parent=11 // pred_check_branch
          %300 = sbr.rel (%p298) target = $region40
        $region39: #{t5_encoder_forward.1} parent=11 // pred_region
          _
        $region40: #{t5_encoder_forward.1} parent=11 // pred_fallthru
          _
        // Predicated region
        $region41: #{t5_encoder_forward.1} parent=11 // pred_check
          %p301 = pneg %p239
        $region42: #{t5_encoder_forward.1} parent=11 // pred_check_branch
          %303 = sbr.rel (%p301) target = $region44
        $region43: #{t5_encoder_forward.1} parent=11 // pred_region
          _
        $region44: #{t5_encoder_forward.1} parent=11 // pred_fallthru
          _
      $region12: #{t5_encoder_forward.1} parent=5 // pred_fallthru
        _
      %p304 = scmp.lt.s32.totalorder %s19, 2
      // Predicated region
      $region45: #{t5_encoder_forward.1} parent=5 // pred_check
        %p305 = pneg %p304
      $region46: #{t5_encoder_forward.1} parent=5 // pred_check_branch
        %307 = sbr.rel (%p305) target = $region48
      $region47: #{t5_encoder_forward.1} parent=5 // pred_region
        // Predicated region
        $region49: #{t5_encoder_forward.1} parent=47 // pred_check
          %p308 = pneg %p39
        $region50: #{t5_encoder_forward.1} parent=47 // pred_check_branch
          %310 = sbr.rel (%p308) target = $region52
        $region51: #{t5_encoder_forward.1} parent=47 // pred_region
          %p311 = scmp.lt.s32.totalorder %s19, 1
          %s312 = scalar_select %p311, %s19, 1
          %s313 = smul.addr %s312, 8
          %s314 = scalar_lea.vmem %s0, %s313
        $region52: #{t5_encoder_forward.1} parent=47 // pred_fallthru
          _
        // Predicated region
        $region53: #{t5_encoder_forward.1} parent=47 // pred_check
          %p315 = pneg %p86
        $region54: #{t5_encoder_forward.1} parent=47 // pred_check_branch
          %317 = sbr.rel (%p315) target = $region56
        $region55: #{t5_encoder_forward.1} parent=47 // pred_region
          %p318 = scmp.lt.s32.totalorder %s19, 1
          %s319 = scalar_select %p318, %s19, 1
          %s320 = scalar_lea.vmem %s2, %s319
        $region56: #{t5_encoder_forward.1} parent=47 // pred_fallthru
          _
      $region48: #{t5_encoder_forward.1} parent=5 // pred_fallthru
        _
      %p321 = scmp.le.s32.totalorder 1, %s19
      %p322 = scmp.lt.s32.totalorder %s19, 3
      %p323 = pnand %p321, %p322
      %p324 = pneg %p323
      // Predicated region
      $region57: #{t5_encoder_forward.1} parent=5 // pred_check
        _
      $region58: #{t5_encoder_forward.1} parent=5 // pred_check_branch
        %326 = sbr.rel (%p323) target = $region60
      $region59: #{t5_encoder_forward.1} parent=5 // pred_region
        %s327 = ssub.s32 %s19, 1
        %p328 = scmp.lt.s32.totalorder %s24, 1
        %s329 = scalar_select %p328, %s24, 1
        %s330 = smul.addr %s329, 8
        %s331 = scalar_lea.vmem %s0, %s330
        %p332 = pneg %p45
        %p333 = pneg %p42
        %p334 = pneg %p66
        %p335 = pneg %p63
        %p336 = scmp.lt.s32.totalorder %s24, 1
        %s337 = scalar_select %p336, %s24, 1
        %s338 = scalar_lea.vmem %s2, %s337
        %p339 = pneg %p92
        %p340 = pneg %p89
        %p341 = pneg %p113
        %p342 = pneg %p110
        %p343 = pneg %p134
        %p344 = pneg %p131
        %p345 = pneg %p155
        %p346 = pneg %p152
        %p347 = pneg %p176
        %p348 = pneg %p173
        %p349 = pneg %p197
        %p350 = pneg %p194
        %p351 = pneg %p218
        %p352 = pneg %p215
        %p353 = pneg %p239
        %p354 = pneg %p236
        %p355 = pneg %p265
        %p356 = pneg %p262
        %s357 = sand.u32 %s252, 1
        %s358 = scalar_lea.sflag [#allocation3], %s357
        %s359 = sand.u32 %s252, 1
        %s360 = smul.addr %s359, 4
        %s361 = scalar_lea.vmem [#allocation2], %s360
        %p362 = scmp.lt.s32.totalorder %s24, 1
        %s363 = scalar_select %p362, %s24, 1
        %s364 = smul.addr %s363, 8
        %s365 = scalar_lea.vmem %s0, %s364
        %p366 = scmp.lt.s32.totalorder %s24, 1
        %s367 = scalar_select %p366, %s24, 1
        %s368 = scalar_lea.vmem %s2, %s367
        %v370 = vld [vmem:[%s365] sm:$0xff]
        %v371 = vld [vmem:[%s368] sm:$0x1]
        %v372 = vsub.f32 1.0, %v371
        %v373 = vmul.f32 %v372, -1e+09
        %v374 = vld [vmem:[%s1] sm:$0xff]
        %v375 = vld [vmem:[%s1 + $0x8] sm:$0xff]
        %v376 = vld [vmem:[%s1 + $0x10] sm:$0xff]
        %v377 = vld [vmem:[%s1 + $0x18] sm:$0xff]
        %v379 = vlaneseq
        %v380 = vshrl.u32 %v379, 7
        %v381 = vsub.s32 0, %v380
        %v382 = vrot.slane %v373, %v381
        %v384 = vadd.f32 %v374, %v382
        %v385 = vadd.f32 %v375, %v382
        %v386 = vadd.f32 %v376, %v382
        %v387 = vadd.f32 %v377, %v382
        %v388 = vld [vmem:[%s3] sm:$0x1]
        %v389 = vmul.f32 %v370, %v370
        %vm390 = vcmask 261120
        %v391 = vsel %vm390, %v389, 0.0
        %392 = vadd.xlane.f32.xlu0 %v391
        %v393 = vpop.xlane.xlu0 %392
        %v394 = vrcp.pop 32.0
        %v395 = vmul.f32 %v393, %v394
        %v396 = vadd.f32 %v395, 1e-06
        %v397 = vrsqrt.pop %v396
        %v398 = vmul.f32 %v370, %v397
        %v400 = vlaneseq
        %v401 = vshrl.u32 %v400, 7
        %v402 = vsub.s32 0, %v401
        %v403 = vrot.slane %v388, %v402
        %v405 = vmul.f32 %v398, %v403
        %v406 = vpack.c.bf16 %v405, %v405
        %v407 = vld [vmem:[%s4] sm:$0xf]
        %v408 = vld [vmem:[%s4 + $0x4] sm:$0xf]
        %v409 = vld [vmem:[%s4 + $0x8] sm:$0xf]
        %v410 = vld [vmem:[%s4 + $0xc] sm:$0xf]
        %v411 = vld [vmem:[%s4 + $0x10] sm:$0xf]
        %v412 = vld [vmem:[%s4 + $0x14] sm:$0xf]
        %v413 = vld [vmem:[%s4 + $0x18] sm:$0xf]
        %v414 = vld [vmem:[%s4 + $0x1c] sm:$0xf]
        %v415 = vld [vmem:[%s4 + $0x20] sm:$0xf]
        %v416 = vld [vmem:[%s4 + $0x24] sm:$0xf]
        %v417 = vld [vmem:[%s4 + $0x28] sm:$0xf]
        %v418 = vld [vmem:[%s4 + $0x2c] sm:$0xf]
        %v419 = vld [vmem:[%s4 + $0x30] sm:$0xf]
        %v420 = vld [vmem:[%s4 + $0x34] sm:$0xf]
        %v421 = vld [vmem:[%s4 + $0x38] sm:$0xf]
        %v422 = vld [vmem:[%s4 + $0x3c] sm:$0xf]
        %v427 = vunpack.c.l.b16 %v407
        %v428 = vunpack.c.l.b16 %v408
        %v429 = vunpack.c.l.b16 %v409
        %v430 = vunpack.c.l.b16 %v410
        %v431 = vpack.c.b16 %v428, %v427
        %v432 = vpack.c.b16 %v430, %v429
        %v436 = vsel %vm390, %v406, 0
        %438 = vmatprep.subr.bf16.mxu0 0
        %439 = vmatpush1.bf16.msra.mxu0 %v431
        %440 = vmatprep.subr.bf16.mxu0 0
        %441 = vmatpush1.bf16.msra.mxu0 %v432
        %442 = vmatprep.subr.bf16.mxu0 0
        %443 = vmatpush1.bf16.msra.mxu0 0
        %444 = vmatprep.subr.bf16.mxu0 0
        %445 = vmatpush1.bf16.msra.mxu0 0
        %446 = vmatprep.subr.bf16.mxu0 0
        %447 = vmatpush1.bf16.msra.mxu0 0
        %448 = vmatprep.subr.bf16.mxu0 0
        %449 = vmatpush1.bf16.msra.mxu0 0
        %450 = vmatprep.subr.bf16.mxu0 0
        %451 = vmatpush1.bf16.msra.mxu0 0
        %452 = vmatprep.subr.bf16.mxu0 0
        %453 = vmatpush1.bf16.msra.mxu0 0
        %454 = vmatprep.subr.bf16.mxu0 0
        %455 = vmatpush1.bf16.msra.mxu0 0
        %456 = vmatprep.subr.bf16.mxu0 0
        %457 = vmatpush1.bf16.msra.mxu0 0
        %458 = vmatprep.subr.bf16.mxu0 0
        %459 = vmatpush1.bf16.msra.mxu0 0
        %460 = vmatprep.subr.bf16.mxu0 0
        %461 = vmatpush1.bf16.msra.mxu0 0
        %462 = vmatprep.subr.bf16.mxu0 0
        %463 = vmatpush1.bf16.msra.mxu0 0
        %464 = vmatprep.subr.bf16.mxu0 0
        %465 = vmatpush1.bf16.msra.mxu0 0
        %466 = vmatprep.subr.bf16.mxu0 0
        %467 = vmatpush1.bf16.msra.mxu0 0
        %468 = vmatprep.subr.bf16.mxu0 0
        %469 = vmatpush1.bf16.msra.mxu0 0
        %470 = vmatprep.mubr.bf16.mxu0 0
        %471 = vmatmul.mubr.bf16.gmra.mrb[0].mxu0 %v436
        %v472 = vpop.f32.mrb[0].mxu0
        %v473 = vadd.f32 0.0, %v472
        %v474 = vpop.f32.mrb[0].mxu0
        %v475 = vpop.f32.mrb[0].mxu0
        %v476 = vpop.f32.mrb[0].mxu0
        %477 = vdwg.mxu0
        %v482 = vunpack.c.l.b16 %v411
        %v483 = vunpack.c.l.b16 %v412
        %v484 = vunpack.c.l.b16 %v413
        %v485 = vunpack.c.l.b16 %v414
        %v486 = vpack.c.b16 %v483, %v482
        %v487 = vpack.c.b16 %v485, %v484
        %490 = vmatprep.subr.bf16.mxu0 0
        %491 = vmatpush1.bf16.msra.mxu0 %v486
        %492 = vmatprep.subr.bf16.mxu0 0
        %493 = vmatpush1.bf16.msra.mxu0 %v487
        %494 = vmatprep.subr.bf16.mxu0 0
        %495 = vmatpush1.bf16.msra.mxu0 0
        %496 = vmatprep.subr.bf16.mxu0 0
        %497 = vmatpush1.bf16.msra.mxu0 0
        %498 = vmatprep.subr.bf16.mxu0 0
        %499 = vmatpush1.bf16.msra.mxu0 0
        %500 = vmatprep.subr.bf16.mxu0 0
        %501 = vmatpush1.bf16.msra.mxu0 0
        %502 = vmatprep.subr.bf16.mxu0 0
        %503 = vmatpush1.bf16.msra.mxu0 0
        %504 = vmatprep.subr.bf16.mxu0 0
        %505 = vmatpush1.bf16.msra.mxu0 0
        %506 = vmatprep.subr.bf16.mxu0 0
        %507 = vmatpush1.bf16.msra.mxu0 0
        %508 = vmatprep.subr.bf16.mxu0 0
        %509 = vmatpush1.bf16.msra.mxu0 0
        %510 = vmatprep.subr.bf16.mxu0 0
        %511 = vmatpush1.bf16.msra.mxu0 0
        %512 = vmatprep.subr.bf16.mxu0 0
        %513 = vmatpush1.bf16.msra.mxu0 0
        %514 = vmatprep.subr.bf16.mxu0 0
        %515 = vmatpush1.bf16.msra.mxu0 0
        %516 = vmatprep.subr.bf16.mxu0 0
        %517 = vmatpush1.bf16.msra.mxu0 0
        %518 = vmatprep.subr.bf16.mxu0 0
        %519 = vmatpush1.bf16.msra.mxu0 0
        %520 = vmatprep.subr.bf16.mxu0 0
        %521 = vmatpush1.bf16.msra.mxu0 0
        %522 = vmatprep.mubr.bf16.mxu0 0
        %523 = vmatmul.mubr.bf16.gmra.mrb[0].mxu0 %v436
        %v524 = vpop.f32.mrb[0].mxu0
        %v525 = vadd.f32 0.0, %v524
        %v526 = vpop.f32.mrb[0].mxu0
        %v527 = vpop.f32.mrb[0].mxu0
        %v528 = vpop.f32.mrb[0].mxu0
        %529 = vdwg.mxu0
        %v534 = vunpack.c.l.b16 %v415
        %v535 = vunpack.c.l.b16 %v416
        %v536 = vunpack.c.l.b16 %v417
        %v537 = vunpack.c.l.b16 %v418
        %v538 = vpack.c.b16 %v535, %v534
        %v539 = vpack.c.b16 %v537, %v536
        %542 = vmatprep.subr.bf16.mxu0 0
        %543 = vmatpush1.bf16.msra.mxu0 %v538
        %544 = vmatprep.subr.bf16.mxu0 0
        %545 = vmatpush1.bf16.msra.mxu0 %v539
        %546 = vmatprep.subr.bf16.mxu0 0
        %547 = vmatpush1.bf16.msra.mxu0 0
        %548 = vmatprep.subr.bf16.mxu0 0
        %549 = vmatpush1.bf16.msra.mxu0 0
        %550 = vmatprep.subr.bf16.mxu0 0
        %551 = vmatpush1.bf16.msra.mxu0 0
        %552 = vmatprep.subr.bf16.mxu0 0
        %553 = vmatpush1.bf16.msra.mxu0 0
        %554 = vmatprep.subr.bf16.mxu0 0
        %555 = vmatpush1.bf16.msra.mxu0 0
        %556 = vmatprep.subr.bf16.mxu0 0
        %557 = vmatpush1.bf16.msra.mxu0 0
        %558 = vmatprep.subr.bf16.mxu0 0
        %559 = vmatpush1.bf16.msra.mxu0 0
        %560 = vmatprep.subr.bf16.mxu0 0
        %561 = vmatpush1.bf16.msra.mxu0 0
        %562 = vmatprep.subr.bf16.mxu0 0
        %563 = vmatpush1.bf16.msra.mxu0 0
        %564 = vmatprep.subr.bf16.mxu0 0
        %565 = vmatpush1.bf16.msra.mxu0 0
        %566 = vmatprep.subr.bf16.mxu0 0
        %567 = vmatpush1.bf16.msra.mxu0 0
        %568 = vmatprep.subr.bf16.mxu0 0
        %569 = vmatpush1.bf16.msra.mxu0 0
        %570 = vmatprep.subr.bf16.mxu0 0
        %571 = vmatpush1.bf16.msra.mxu0 0
        %572 = vmatprep.subr.bf16.mxu0 0
        %573 = vmatpush1.bf16.msra.mxu0 0
        %574 = vmatprep.mubr.bf16.mxu0 0
        %575 = vmatmul.mubr.bf16.gmra.mrb[0].mxu0 %v436
        %v576 = vpop.f32.mrb[0].mxu0
        %v577 = vadd.f32 0.0, %v576
        %v578 = vpop.f32.mrb[0].mxu0
        %v579 = vpop.f32.mrb[0].mxu0
        %v580 = vpop.f32.mrb[0].mxu0
        %581 = vdwg.mxu0
        %v586 = vunpack.c.l.b16 %v419
        %v587 = vunpack.c.l.b16 %v420
        %v588 = vunpack.c.l.b16 %v421
        %v589 = vunpack.c.l.b16 %v422
        %v590 = vpack.c.b16 %v587, %v586
        %v591 = vpack.c.b16 %v589, %v588
        %594 = vmatprep.subr.bf16.mxu0 0
        %595 = vmatpush1.bf16.msra.mxu0 %v590
        %596 = vmatprep.subr.bf16.mxu0 0
        %597 = vmatpush1.bf16.msra.mxu0 %v591
        %598 = vmatprep.subr.bf16.mxu0 0
        %599 = vmatpush1.bf16.msra.mxu0 0
        %600 = vmatprep.subr.bf16.mxu0 0
        %601 = vmatpush1.bf16.msra.mxu0 0
        %602 = vmatprep.subr.bf16.mxu0 0
        %603 = vmatpush1.bf16.msra.mxu0 0
        %604 = vmatprep.subr.bf16.mxu0 0
        %605 = vmatpush1.bf16.msra.mxu0 0
        %606 = vmatprep.subr.bf16.mxu0 0
        %607 = vmatpush1.bf16.msra.mxu0 0
        %608 = vmatprep.subr.bf16.mxu0 0
        %609 = vmatpush1.bf16.msra.mxu0 0
        %610 = vmatprep.subr.bf16.mxu0 0
        %611 = vmatpush1.bf16.msra.mxu0 0
        %612 = vmatprep.subr.bf16.mxu0 0
        %613 = vmatpush1.bf16.msra.mxu0 0
        %614 = vmatprep.subr.bf16.mxu0 0
        %615 = vmatpush1.bf16.msra.mxu0 0
        %616 = vmatprep.subr.bf16.mxu0 0
        %617 = vmatpush1.bf16.msra.mxu0 0
        %618 = vmatprep.subr.bf16.mxu0 0
        %619 = vmatpush1.bf16.msra.mxu0 0
        %620 = vmatprep.subr.bf16.mxu0 0
        %621 = vmatpush1.bf16.msra.mxu0 0
        %622 = vmatprep.subr.bf16.mxu0 0
        %623 = vmatpush1.bf16.msra.mxu0 0
        %624 = vmatprep.subr.bf16.mxu0 0
        %625 = vmatpush1.bf16.msra.mxu0 0
        %626 = vmatprep.mubr.bf16.mxu0 0
        %627 = vmatmul.mubr.bf16.gmra.mrb[0].mxu0 %v436
        %v628 = vpop.f32.mrb[0].mxu0
        %v629 = vadd.f32 0.0, %v628
        %v630 = vpop.f32.mrb[0].mxu0
        %v631 = vpop.f32.mrb[0].mxu0
        %v632 = vpop.f32.mrb[0].mxu0
        %633 = vdwg.mxu0
        %v634 = vpack.c.bf16 %v473, %v473
        %v635 = vpack.c.bf16 %v525, %v525
        %v636 = vpack.c.bf16 %v577, %v577
        %v637 = vpack.c.bf16 %v629, %v629
        %639 = vrot.lane.b32.xlu0 %v634, 120
        %v640 = vpop.permute.xlu0 %639
        %vm641 = vcmask 64512
        %v643 = vsel %vm641, %v634, 0
        %v646 = vsel %vm641, %v640, 0
        %648 = vmatprep.subr.bf16.mxu0 0
        %649 = vmatpush1.bf16.xpose.msra.mxu0 %v646
        %650 = vmatprep.subr.bf16.mxu0 0
        %651 = vmatpush1.bf16.xpose.msra.mxu0 0
        %652 = vmatprep.subr.bf16.mxu0 0
        %653 = vmatpush1.bf16.xpose.msra.mxu0 0
        %654 = vmatprep.subr.bf16.mxu0 0
        %655 = vmatpush1.bf16.xpose.msra.mxu0 0
        %656 = vmatprep.subr.bf16.mxu0 0
        %657 = vmatpush1.bf16.xpose.msra.mxu0 0
        %658 = vmatprep.subr.bf16.mxu0 0
        %659 = vmatpush1.bf16.xpose.msra.mxu0 0
        %660 = vmatprep.subr.bf16.mxu0 0
        %661 = vmatpush1.bf16.xpose.msra.mxu0 0
        %662 = vmatprep.subr.bf16.mxu0 0
        %663 = vmatpush1.bf16.xpose.msra.mxu0 0
        %664 = vmatprep.subr.bf16.mxu0 0
        %665 = vmatpush1.bf16.xpose.msra.mxu0 0
        %666 = vmatprep.subr.bf16.mxu0 0
        %667 = vmatpush1.bf16.xpose.msra.mxu0 0
        %668 = vmatprep.subr.bf16.mxu0 0
        %669 = vmatpush1.bf16.xpose.msra.mxu0 0
        %670 = vmatprep.subr.bf16.mxu0 0
        %671 = vmatpush1.bf16.xpose.msra.mxu0 0
        %672 = vmatprep.subr.bf16.mxu0 0
        %673 = vmatpush1.bf16.xpose.msra.mxu0 0
        %674 = vmatprep.subr.bf16.mxu0 0
        %675 = vmatpush1.bf16.xpose.msra.mxu0 0
        %676 = vmatprep.subr.bf16.mxu0 0
        %677 = vmatpush1.bf16.xpose.msra.mxu0 0
        %678 = vmatprep.subr.bf16.mxu0 0
        %679 = vmatpush1.bf16.xpose.msra.mxu0 0
        %680 = vmatprep.mubr.bf16.mxu0 0
        %681 = vmatmul.mubr.bf16.gmra.mrb[0].mxu0 %v643
        %v682 = vpop.f32.mrb[0].mxu0
        %v683 = vadd.f32 %v384, %v682
        %v684 = vpop.f32.mrb[0].mxu0
        %v685 = vpop.f32.mrb[0].mxu0
        %v686 = vpop.f32.mrb[0].mxu0
        %687 = vdwg.mxu0
        %689 = vrot.lane.b32.xlu0 %v635, 120
        %v690 = vpop.permute.xlu0 %689
        %v692 = vsel %vm641, %v635, 0
        %v695 = vsel %vm641, %v690, 0
        %697 = vmatprep.subr.bf16.mxu0 0
        %698 = vmatpush1.bf16.xpose.msra.mxu0 %v695
        %699 = vmatprep.subr.bf16.mxu0 0
        %700 = vmatpush1.bf16.xpose.msra.mxu0 0
        %701 = vmatprep.subr.bf16.mxu0 0
        %702 = vmatpush1.bf16.xpose.msra.mxu0 0
        %703 = vmatprep.subr.bf16.mxu0 0
        %704 = vmatpush1.bf16.xpose.msra.mxu0 0
        %705 = vmatprep.subr.bf16.mxu0 0
        %706 = vmatpush1.bf16.xpose.msra.mxu0 0
        %707 = vmatprep.subr.bf16.mxu0 0
        %708 = vmatpush1.bf16.xpose.msra.mxu0 0
        %709 = vmatprep.subr.bf16.mxu0 0
        %710 = vmatpush1.bf16.xpose.msra.mxu0 0
        %711 = vmatprep.subr.bf16.mxu0 0
        %712 = vmatpush1.bf16.xpose.msra.mxu0 0
        %713 = vmatprep.subr.bf16.mxu0 0
        %714 = vmatpush1.bf16.xpose.msra.mxu0 0
        %715 = vmatprep.subr.bf16.mxu0 0
        %716 = vmatpush1.bf16.xpose.msra.mxu0 0
        %717 = vmatprep.subr.bf16.mxu0 0
        %718 = vmatpush1.bf16.xpose.msra.mxu0 0
        %719 = vmatprep.subr.bf16.mxu0 0
        %720 = vmatpush1.bf16.xpose.msra.mxu0 0
        %721 = vmatprep.subr.bf16.mxu0 0
        %722 = vmatpush1.bf16.xpose.msra.mxu0 0
        %723 = vmatprep.subr.bf16.mxu0 0
        %724 = vmatpush1.bf16.xpose.msra.mxu0 0
        %725 = vmatprep.subr.bf16.mxu0 0
        %726 = vmatpush1.bf16.xpose.msra.mxu0 0
        %727 = vmatprep.subr.bf16.mxu0 0
        %728 = vmatpush1.bf16.xpose.msra.mxu0 0
        %729 = vmatprep.mubr.bf16.mxu0 0
        %730 = vmatmul.mubr.bf16.gmra.mrb[0].mxu0 %v692
        %v731 = vpop.f32.mrb[0].mxu0
        %v732 = vadd.f32 %v385, %v731
        %v733 = vpop.f32.mrb[0].mxu0
        %v734 = vpop.f32.mrb[0].mxu0
        %v735 = vpop.f32.mrb[0].mxu0
        %736 = vdwg.mxu0
        %738 = vrot.lane.b32.xlu0 %v636, 120
        %v739 = vpop.permute.xlu0 %738
        %v741 = vsel %vm641, %v636, 0
        %v744 = vsel %vm641, %v739, 0
        %746 = vmatprep.subr.bf16.mxu0 0
        %747 = vmatpush1.bf16.xpose.msra.mxu0 %v744
        %748 = vmatprep.subr.bf16.mxu0 0
        %749 = vmatpush1.bf16.xpose.msra.mxu0 0
        %750 = vmatprep.subr.bf16.mxu0 0
        %751 = vmatpush1.bf16.xpose.msra.mxu0 0
        %752 = vmatprep.subr.bf16.mxu0 0
        %753 = vmatpush1.bf16.xpose.msra.mxu0 0
        %754 = vmatprep.subr.bf16.mxu0 0
        %755 = vmatpush1.bf16.xpose.msra.mxu0 0
        %756 = vmatprep.subr.bf16.mxu0 0
        %757 = vmatpush1.bf16.xpose.msra.mxu0 0
        %758 = vmatprep.subr.bf16.mxu0 0
        %759 = vmatpush1.bf16.xpose.msra.mxu0 0
        %760 = vmatprep.subr.bf16.mxu0 0
        %761 = vmatpush1.bf16.xpose.msra.mxu0 0
        %762 = vmatprep.subr.bf16.mxu0 0
        %763 = vmatpush1.bf16.xpose.msra.mxu0 0
        %764 = vmatprep.subr.bf16.mxu0 0
        %765 = vmatpush1.bf16.xpose.msra.mxu0 0
        %766 = vmatprep.subr.bf16.mxu0 0
        %767 = vmatpush1.bf16.xpose.msra.mxu0 0
        %768 = vmatprep.subr.bf16.mxu0 0
        %769 = vmatpush1.bf16.xpose.msra.mxu0 0
        %770 = vmatprep.subr.bf16.mxu0 0
        %771 = vmatpush1.bf16.xpose.msra.mxu0 0
        %772 = vmatprep.subr.bf16.mxu0 0
        %773 = vmatpush1.bf16.xpose.msra.mxu0 0
        %774 = vmatprep.subr.bf16.mxu0 0
        %775 = vmatpush1.bf16.xpose.msra.mxu0 0
        %776 = vmatprep.subr.bf16.mxu0 0
        %777 = vmatpush1.bf16.xpose.msra.mxu0 0
        %778 = vmatprep.mubr.bf16.mxu0 0
        %779 = vmatmul.mubr.bf16.gmra.mrb[0].mxu0 %v741
        %v780 = vpop.f32.mrb[0].mxu0
        %v781 = vadd.f32 %v386, %v780
        %v782 = vpop.f32.mrb[0].mxu0
        %v783 = vpop.f32.mrb[0].mxu0
        %v784 = vpop.f32.mrb[0].mxu0
        %785 = vdwg.mxu0
        %787 = vrot.lane.b32.xlu0 %v637, 120
        %v788 = vpop.permute.xlu0 %787
        %v790 = vsel %vm641, %v637, 0
        %v793 = vsel %vm641, %v788, 0
        %795 = vmatprep.subr.bf16.mxu0 0
        %796 = vmatpush1.bf16.xpose.msra.mxu0 %v793
        %797 = vmatprep.subr.bf16.mxu0 0
        %798 = vmatpush1.bf16.xpose.msra.mxu0 0
        %799 = vmatprep.subr.bf16.mxu0 0
        %800 = vmatpush1.bf16.xpose.msra.mxu0 0
        %801 = vmatprep.subr.bf16.mxu0 0
        %802 = vmatpush1.bf16.xpose.msra.mxu0 0
        %803 = vmatprep.subr.bf16.mxu0 0
        %804 = vmatpush1.bf16.xpose.msra.mxu0 0
        %805 = vmatprep.subr.bf16.mxu0 0
        %806 = vmatpush1.bf16.xpose.msra.mxu0 0
        %807 = vmatprep.subr.bf16.mxu0 0
        %808 = vmatpush1.bf16.xpose.msra.mxu0 0
        %809 = vmatprep.subr.bf16.mxu0 0
        %810 = vmatpush1.bf16.xpose.msra.mxu0 0
        %811 = vmatprep.subr.bf16.mxu0 0
        %812 = vmatpush1.bf16.xpose.msra.mxu0 0
        %813 = vmatprep.subr.bf16.mxu0 0
        %814 = vmatpush1.bf16.xpose.msra.mxu0 0
        %815 = vmatprep.subr.bf16.mxu0 0
        %816 = vmatpush1.bf16.xpose.msra.mxu0 0
        %817 = vmatprep.subr.bf16.mxu0 0
        %818 = vmatpush1.bf16.xpose.msra.mxu0 0
        %819 = vmatprep.subr.bf16.mxu0 0
        %820 = vmatpush1.bf16.xpose.msra.mxu0 0
        %821 = vmatprep.subr.bf16.mxu0 0
        %822 = vmatpush1.bf16.xpose.msra.mxu0 0
        %823 = vmatprep.subr.bf16.mxu0 0
        %824 = vmatpush1.bf16.xpose.msra.mxu0 0
        %825 = vmatprep.subr.bf16.mxu0 0
        %826 = vmatpush1.bf16.xpose.msra.mxu0 0
        %827 = vmatprep.mubr.bf16.mxu0 0
        %828 = vmatmul.mubr.bf16.gmra.mrb[0].mxu0 %v790
        %v829 = vpop.f32.mrb[0].mxu0
        %v830 = vadd.f32 %v387, %v829
        %v831 = vpop.f32.mrb[0].mxu0
        %v832 = vpop.f32.mrb[0].mxu0
        %v833 = vpop.f32.mrb[0].mxu0
        %834 = vdwg.mxu0
        %v835 = vsel %vm641, %v683, -inf
        %836 = vmax.xlane.f32.xlu0 %v835
        %v837 = vpop.xlane.xlu0 %836
        %v838 = vsel %vm641, %v732, -inf
        %839 = vmax.xlane.f32.xlu0 %v838
        %v840 = vpop.xlane.xlu0 %839
        %v841 = vsel %vm641, %v781, -inf
        %842 = vmax.xlane.f32.xlu0 %v841
        %v843 = vpop.xlane.xlu0 %842
        %v844 = vsel %vm641, %v830, -inf
        %845 = vmax.xlane.f32.xlu0 %v844
        %v846 = vpop.xlane.xlu0 %845
        %v847 = vsub.f32 %v683, %v837
        %v848 = vsub.f32 %v732, %v840
        %v849 = vsub.f32 %v781, %v843
        %v850 = vsub.f32 %v830, %v846
        %v851 = vmul.f32 %v847, 1.442695
        %v852 = vpow.pop %v851
        %v853 = vmul.f32 %v848, 1.442695
        %v854 = vpow.pop %v853
        %v855 = vmul.f32 %v849, 1.442695
        %v856 = vpow.pop %v855
        %v857 = vmul.f32 %v850, 1.442695
        %v858 = vpow.pop %v857
        %v859 = vsel %vm641, %v852, 0.0
        %860 = vadd.xlane.f32.xlu0 %v859
        %v861 = vpop.xlane.xlu0 %860
        %v862 = vsel %vm641, %v854, 0.0
        %863 = vadd.xlane.f32.xlu0 %v862
        %v864 = vpop.xlane.xlu0 %863
        %v865 = vsel %vm641, %v856, 0.0
        %866 = vadd.xlane.f32.xlu0 %v865
        %v867 = vpop.xlane.xlu0 %866
        %v868 = vsel %vm641, %v858, 0.0
        %869 = vadd.xlane.f32.xlu0 %v868
        %v870 = vpop.xlane.xlu0 %869
        %v871 = vrcp.pop %v861
        %v872 = vrcp.pop %v864
        %v873 = vrcp.pop %v867
        %v874 = vrcp.pop %v870
        %v875 = vmul.f32 %v852, %v871
        %v876 = vmul.f32 %v854, %v872
        %v877 = vmul.f32 %v856, %v873
        %v878 = vmul.f32 %v858, %v874
        %v879 = vpack.c.bf16 %v875, %v875
        %v880 = vpack.c.bf16 %v876, %v876
        %v881 = vpack.c.bf16 %v877, %v877
        %v882 = vpack.c.bf16 %v878, %v878
        %883 = vrot.lane.b32.xlu0 %v634, 112
        %v884 = vpop.permute.xlu0 %883
        %v886 = vsel %vm641, %v879, 0
        %vm888 = vcmask 1043456
        %v890 = vsel %vm888, %v884, 0
        %892 = vmatprep.subr.bf16.mxu0 0
        %893 = vmatpush1.bf16.msra.mxu0 %v890
        %894 = vmatprep.subr.bf16.mxu0 0
        %895 = vmatpush1.bf16.msra.mxu0 0
        %896 = vmatprep.subr.bf16.mxu0 0
        %897 = vmatpush1.bf16.msra.mxu0 0
        %898 = vmatprep.subr.bf16.mxu0 0
        %899 = vmatpush1.bf16.msra.mxu0 0
        %900 = vmatprep.subr.bf16.mxu0 0
        %901 = vmatpush1.bf16.msra.mxu0 0
        %902 = vmatprep.subr.bf16.mxu0 0
        %903 = vmatpush1.bf16.msra.mxu0 0
        %904 = vmatprep.subr.bf16.mxu0 0
        %905 = vmatpush1.bf16.msra.mxu0 0
        %906 = vmatprep.subr.bf16.mxu0 0
        %907 = vmatpush1.bf16.msra.mxu0 0
        %908 = vmatprep.subr.bf16.mxu0 0
        %909 = vmatpush1.bf16.msra.mxu0 0
        %910 = vmatprep.subr.bf16.mxu0 0
        %911 = vmatpush1.bf16.msra.mxu0 0
        %912 = vmatprep.subr.bf16.mxu0 0
        %913 = vmatpush1.bf16.msra.mxu0 0
        %914 = vmatprep.subr.bf16.mxu0 0
        %915 = vmatpush1.bf16.msra.mxu0 0
        %916 = vmatprep.subr.bf16.mxu0 0
        %917 = vmatpush1.bf16.msra.mxu0 0
        %918 = vmatprep.subr.bf16.mxu0 0
        %919 = vmatpush1.bf16.msra.mxu0 0
        %920 = vmatprep.subr.bf16.mxu0 0
        %921 = vmatpush1.bf16.msra.mxu0 0
        %922 = vmatprep.subr.bf16.mxu0 0
        %923 = vmatpush1.bf16.msra.mxu0 0
        %924 = vmatprep.mubr.bf16.mxu0 0
        %925 = vmatmul.mubr.bf16.gmra.mrb[0].mxu0 %v886
        %v926 = vpop.f32.mrb[0].mxu0
        %v927 = vadd.f32 0.0, %v926
        %v928 = vpop.f32.mrb[0].mxu0
        %v929 = vpop.f32.mrb[0].mxu0
        %v930 = vpop.f32.mrb[0].mxu0
        %931 = vdwg.mxu0
        %932 = vrot.lane.b32.xlu0 %v635, 112
        %v933 = vpop.permute.xlu0 %932
        %v935 = vsel %vm641, %v880, 0
        %v938 = vsel %vm888, %v933, 0
        %940 = vmatprep.subr.bf16.mxu0 0
        %941 = vmatpush1.bf16.msra.mxu0 %v938
        %942 = vmatprep.subr.bf16.mxu0 0
        %943 = vmatpush1.bf16.msra.mxu0 0
        %944 = vmatprep.subr.bf16.mxu0 0
        %945 = vmatpush1.bf16.msra.mxu0 0
        %946 = vmatprep.subr.bf16.mxu0 0
        %947 = vmatpush1.bf16.msra.mxu0 0
        %948 = vmatprep.subr.bf16.mxu0 0
        %949 = vmatpush1.bf16.msra.mxu0 0
        %950 = vmatprep.subr.bf16.mxu0 0
        %951 = vmatpush1.bf16.msra.mxu0 0
        %952 = vmatprep.subr.bf16.mxu0 0
        %953 = vmatpush1.bf16.msra.mxu0 0
        %954 = vmatprep.subr.bf16.mxu0 0
        %955 = vmatpush1.bf16.msra.mxu0 0
        %956 = vmatprep.subr.bf16.mxu0 0
        %957 = vmatpush1.bf16.msra.mxu0 0
        %958 = vmatprep.subr.bf16.mxu0 0
        %959 = vmatpush1.bf16.msra.mxu0 0
        %960 = vmatprep.subr.bf16.mxu0 0
        %961 = vmatpush1.bf16.msra.mxu0 0
        %962 = vmatprep.subr.bf16.mxu0 0
        %963 = vmatpush1.bf16.msra.mxu0 0
        %964 = vmatprep.subr.bf16.mxu0 0
        %965 = vmatpush1.bf16.msra.mxu0 0
        %966 = vmatprep.subr.bf16.mxu0 0
        %967 = vmatpush1.bf16.msra.mxu0 0
        %968 = vmatprep.subr.bf16.mxu0 0
        %969 = vmatpush1.bf16.msra.mxu0 0
        %970 = vmatprep.subr.bf16.mxu0 0
        %971 = vmatpush1.bf16.msra.mxu0 0
        %972 = vmatprep.mubr.bf16.mxu0 0
        %973 = vmatmul.mubr.bf16.gmra.mrb[0].mxu0 %v935
        %v974 = vpop.f32.mrb[0].mxu0
        %v975 = vadd.f32 0.0, %v974
        %v976 = vpop.f32.mrb[0].mxu0
        %v977 = vpop.f32.mrb[0].mxu0
        %v978 = vpop.f32.mrb[0].mxu0
        %979 = vdwg.mxu0
        %980 = vrot.lane.b32.xlu0 %v636, 112
        %v981 = vpop.permute.xlu0 %980
        %v983 = vsel %vm641, %v881, 0
        %v986 = vsel %vm888, %v981, 0
        %988 = vmatprep.subr.bf16.mxu0 0
        %989 = vmatpush1.bf16.msra.mxu0 %v986
        %990 = vmatprep.subr.bf16.mxu0 0
        %991 = vmatpush1.bf16.msra.mxu0 0
        %992 = vmatprep.subr.bf16.mxu0 0
        %993 = vmatpush1.bf16.msra.mxu0 0
        %994 = vmatprep.subr.bf16.mxu0 0
        %995 = vmatpush1.bf16.msra.mxu0 0
        %996 = vmatprep.subr.bf16.mxu0 0
        %997 = vmatpush1.bf16.msra.mxu0 0
        %998 = vmatprep.subr.bf16.mxu0 0
        %999 = vmatpush1.bf16.msra.mxu0 0
        %1000 = vmatprep.subr.bf16.mxu0 0
        %1001 = vmatpush1.bf16.msra.mxu0 0
        %1002 = vmatprep.subr.bf16.mxu0 0
        %1003 = vmatpush1.bf16.msra.mxu0 0
        %1004 = vmatprep.subr.bf16.mxu0 0
        %1005 = vmatpush1.bf16.msra.mxu0 0
        %1006 = vmatprep.subr.bf16.mxu0 0
        %1007 = vmatpush1.bf16.msra.mxu0 0
        %1008 = vmatprep.subr.bf16.mxu0 0
        %1009 = vmatpush1.bf16.msra.mxu0 0
        %1010 = vmatprep.subr.bf16.mxu0 0
        %1011 = vmatpush1.bf16.msra.mxu0 0
        %1012 = vmatprep.subr.bf16.mxu0 0
        %1013 = vmatpush1.bf16.msra.mxu0 0
        %1014 = vmatprep.subr.bf16.mxu0 0
        %1015 = vmatpush1.bf16.msra.mxu0 0
        %1016 = vmatprep.subr.bf16.mxu0 0
        %1017 = vmatpush1.bf16.msra.mxu0 0
        %1018 = vmatprep.subr.bf16.mxu0 0
        %1019 = vmatpush1.bf16.msra.mxu0 0
        %1020 = vmatprep.mubr.bf16.mxu0 0
        %1021 = vmatmul.mubr.bf16.gmra.mrb[0].mxu0 %v983
        %v1022 = vpop.f32.mrb[0].mxu0
        %v1023 = vadd.f32 0.0, %v1022
        %v1024 = vpop.f32.mrb[0].mxu0
        %v1025 = vpop.f32.mrb[0].mxu0
        %v1026 = vpop.f32.mrb[0].mxu0
        %1027 = vdwg.mxu0
        %1028 = vrot.lane.b32.xlu0 %v637, 112
        %v1029 = vpop.permute.xlu0 %1028
        %v1031 = vsel %vm641, %v882, 0
        %v1034 = vsel %vm888, %v1029, 0
        %1036 = vmatprep.subr.bf16.mxu0 0
        %1037 = vmatpush1.bf16.msra.mxu0 %v1034
        %1038 = vmatprep.subr.bf16.mxu0 0
        %1039 = vmatpush1.bf16.msra.mxu0 0
        %1040 = vmatprep.subr.bf16.mxu0 0
        %1041 = vmatpush1.bf16.msra.mxu0 0
        %1042 = vmatprep.subr.bf16.mxu0 0
        %1043 = vmatpush1.bf16.msra.mxu0 0
        %1044 = vmatprep.subr.bf16.mxu0 0
        %1045 = vmatpush1.bf16.msra.mxu0 0
        %1046 = vmatprep.subr.bf16.mxu0 0
        %1047 = vmatpush1.bf16.msra.mxu0 0
        %1048 = vmatprep.subr.bf16.mxu0 0
        %1049 = vmatpush1.bf16.msra.mxu0 0
        %1050 = vmatprep.subr.bf16.mxu0 0
        %1051 = vmatpush1.bf16.msra.mxu0 0
        %1052 = vmatprep.subr.bf16.mxu0 0
        %1053 = vmatpush1.bf16.msra.mxu0 0
        %1054 = vmatprep.subr.bf16.mxu0 0
        %1055 = vmatpush1.bf16.msra.mxu0 0
        %1056 = vmatprep.subr.bf16.mxu0 0
        %1057 = vmatpush1.bf16.msra.mxu0 0
        %1058 = vmatprep.subr.bf16.mxu0 0
        %1059 = vmatpush1.bf16.msra.mxu0 0
        %1060 = vmatprep.subr.bf16.mxu0 0
        %1061 = vmatpush1.bf16.msra.mxu0 0
        %1062 = vmatprep.subr.bf16.mxu0 0
        %1063 = vmatpush1.bf16.msra.mxu0 0
        %1064 = vmatprep.subr.bf16.mxu0 0
        %1065 = vmatpush1.bf16.msra.mxu0 0
        %1066 = vmatprep.subr.bf16.mxu0 0
        %1067 = vmatpush1.bf16.msra.mxu0 0
        %1068 = vmatprep.mubr.bf16.mxu0 0
        %1069 = vmatmul.mubr.bf16.gmra.mrb[0].mxu0 %v1031
        %v1070 = vpop.f32.mrb[0].mxu0
        %v1071 = vadd.f32 0.0, %v1070
        %v1072 = vpop.f32.mrb[0].mxu0
        %v1073 = vpop.f32.mrb[0].mxu0
        %v1074 = vpop.f32.mrb[0].mxu0
        %1075 = vdwg.mxu0
        %v1076 = vpack.c.bf16 %v927, %v927
        %v1077 = vpack.c.bf16 %v975, %v975
        %v1078 = vpack.c.bf16 %v1023, %v1023
        %v1079 = vpack.c.bf16 %v1071, %v1071
        %v1080 = vld [vmem:[%s5] sm:$0xf]
        %v1081 = vld [vmem:[%s5 + $0x4] sm:$0xf]
        %v1082 = vld [vmem:[%s5 + $0x8] sm:$0xf]
        %v1083 = vld [vmem:[%s5 + $0xc] sm:$0xf]
        %v1085 = vsel %vm641, %v1076, 0
        %v1088 = vsel %vm888, %v1080, 0
        %1090 = vmatprep.subr.bf16.mxu0 0
        %1091 = vmatpush1.bf16.msra.mxu0 %v1088
        %1092 = vmatprep.subr.bf16.mxu0 0
        %1093 = vmatpush1.bf16.msra.mxu0 0
        %1094 = vmatprep.subr.bf16.mxu0 0
        %1095 = vmatpush1.bf16.msra.mxu0 0
        %1096 = vmatprep.subr.bf16.mxu0 0
        %1097 = vmatpush1.bf16.msra.mxu0 0
        %1098 = vmatprep.subr.bf16.mxu0 0
        %1099 = vmatpush1.bf16.msra.mxu0 0
        %1100 = vmatprep.subr.bf16.mxu0 0
        %1101 = vmatpush1.bf16.msra.mxu0 0
        %1102 = vmatprep.subr.bf16.mxu0 0
        %1103 = vmatpush1.bf16.msra.mxu0 0
        %1104 = vmatprep.subr.bf16.mxu0 0
        %1105 = vmatpush1.bf16.msra.mxu0 0
        %1106 = vmatprep.subr.bf16.mxu0 0
        %1107 = vmatpush1.bf16.msra.mxu0 0
        %1108 = vmatprep.subr.bf16.mxu0 0
        %1109 = vmatpush1.bf16.msra.mxu0 0
        %1110 = vmatprep.subr.bf16.mxu0 0
        %1111 = vmatpush1.bf16.msra.mxu0 0
        %1112 = vmatprep.subr.bf16.mxu0 0
        %1113 = vmatpush1.bf16.msra.mxu0 0
        %1114 = vmatprep.subr.bf16.mxu0 0
        %1115 = vmatpush1.bf16.msra.mxu0 0
        %1116 = vmatprep.subr.bf16.mxu0 0
        %1117 = vmatpush1.bf16.msra.mxu0 0
        %1118 = vmatprep.subr.bf16.mxu0 0
        %1119 = vmatpush1.bf16.msra.mxu0 0
        %1120 = vmatprep.subr.bf16.mxu0 0
        %1121 = vmatpush1.bf16.msra.mxu0 0
        %1122 = vmatprep.mubr.bf16.mxu0 0
        %1123 = vmatmul.mubr.bf16.gmra.mrb[0].mxu0 %v1085
        %v1124 = vpop.f32.mrb[0].mxu0
        %v1125 = vadd.f32 0.0, %v1124
        %v1126 = vpop.f32.mrb[0].mxu0
        %v1127 = vpop.f32.mrb[0].mxu0
        %v1128 = vpop.f32.mrb[0].mxu0
        %1129 = vdwg.mxu0
        %v1131 = vsel %vm641, %v1077, 0
        %v1134 = vsel %vm888, %v1081, 0
        %1136 = vmatprep.subr.bf16.mxu0 0
        %1137 = vmatpush1.bf16.msra.mxu0 %v1134
        %1138 = vmatprep.subr.bf16.mxu0 0
        %1139 = vmatpush1.bf16.msra.mxu0 0
        %1140 = vmatprep.subr.bf16.mxu0 0
        %1141 = vmatpush1.bf16.msra.mxu0 0
        %1142 = vmatprep.subr.bf16.mxu0 0
        %1143 = vmatpush1.bf16.msra.mxu0 0
        %1144 = vmatprep.subr.bf16.mxu0 0
        %1145 = vmatpush1.bf16.msra.mxu0 0
        %1146 = vmatprep.subr.bf16.mxu0 0
        %1147 = vmatpush1.bf16.msra.mxu0 0
        %1148 = vmatprep.subr.bf16.mxu0 0
        %1149 = vmatpush1.bf16.msra.mxu0 0
        %1150 = vmatprep.subr.bf16.mxu0 0
        %1151 = vmatpush1.bf16.msra.mxu0 0
        %1152 = vmatprep.subr.bf16.mxu0 0
        %1153 = vmatpush1.bf16.msra.mxu0 0
        %1154 = vmatprep.subr.bf16.mxu0 0
        %1155 = vmatpush1.bf16.msra.mxu0 0
        %1156 = vmatprep.subr.bf16.mxu0 0
        %1157 = vmatpush1.bf16.msra.mxu0 0
        %1158 = vmatprep.subr.bf16.mxu0 0
        %1159 = vmatpush1.bf16.msra.mxu0 0
        %1160 = vmatprep.subr.bf16.mxu0 0
        %1161 = vmatpush1.bf16.msra.mxu0 0
        %1162 = vmatprep.subr.bf16.mxu0 0
        %1163 = vmatpush1.bf16.msra.mxu0 0
        %1164 = vmatprep.subr.bf16.mxu0 0
        %1165 = vmatpush1.bf16.msra.mxu0 0
        %1166 = vmatprep.subr.bf16.mxu0 0
        %1167 = vmatpush1.bf16.msra.mxu0 0
        %1168 = vmatprep.mubr.bf16.mxu0 0
        %1169 = vmatmul.mubr.bf16.gmra.mrb[0].mxu0 %v1131
        %v1170 = vpop.f32.mrb[0].mxu0
        %v1171 = vadd.f32 0.0, %v1170
        %v1172 = vpop.f32.mrb[0].mxu0
        %v1173 = vpop.f32.mrb[0].mxu0
        %v1174 = vpop.f32.mrb[0].mxu0
        %1175 = vdwg.mxu0
        %v1177 = vsel %vm641, %v1078, 0
        %v1180 = vsel %vm888, %v1082, 0
        %1182 = vmatprep.subr.bf16.mxu0 0
        %1183 = vmatpush1.bf16.msra.mxu0 %v1180
        %1184 = vmatprep.subr.bf16.mxu0 0
        %1185 = vmatpush1.bf16.msra.mxu0 0
        %1186 = vmatprep.subr.bf16.mxu0 0
        %1187 = vmatpush1.bf16.msra.mxu0 0
        %1188 = vmatprep.subr.bf16.mxu0 0
        %1189 = vmatpush1.bf16.msra.mxu0 0
        %1190 = vmatprep.subr.bf16.mxu0 0
        %1191 = vmatpush1.bf16.msra.mxu0 0
        %1192 = vmatprep.subr.bf16.mxu0 0
        %1193 = vmatpush1.bf16.msra.mxu0 0
        %1194 = vmatprep.subr.bf16.mxu0 0
        %1195 = vmatpush1.bf16.msra.mxu0 0
        %1196 = vmatprep.subr.bf16.mxu0 0
        %1197 = vmatpush1.bf16.msra.mxu0 0
        %1198 = vmatprep.subr.bf16.mxu0 0
        %1199 = vmatpush1.bf16.msra.mxu0 0
        %1200 = vmatprep.subr.bf16.mxu0 0
        %1201 = vmatpush1.bf16.msra.mxu0 0
        %1202 = vmatprep.subr.bf16.mxu0 0
        %1203 = vmatpush1.bf16.msra.mxu0 0
        %1204 = vmatprep.subr.bf16.mxu0 0
        %1205 = vmatpush1.bf16.msra.mxu0 0
        %1206 = vmatprep.subr.bf16.mxu0 0
        %1207 = vmatpush1.bf16.msra.mxu0 0
        %1208 = vmatprep.subr.bf16.mxu0 0
        %1209 = vmatpush1.bf16.msra.mxu0 0
        %1210 = vmatprep.subr.bf16.mxu0 0
        %1211 = vmatpush1.bf16.msra.mxu0 0
        %1212 = vmatprep.subr.bf16.mxu0 0
        %1213 = vmatpush1.bf16.msra.mxu0 0
        %1214 = vmatprep.mubr.bf16.mxu0 0
        %1215 = vmatmul.mubr.bf16.gmra.mrb[0].mxu0 %v1177
        %v1216 = vpop.f32.mrb[0].mxu0
        %v1217 = vadd.f32 0.0, %v1216
        %v1218 = vpop.f32.mrb[0].mxu0
        %v1219 = vpop.f32.mrb[0].mxu0
        %v1220 = vpop.f32.mrb[0].mxu0
        %1221 = vdwg.mxu0
        %v1223 = vsel %vm641, %v1079, 0
        %v1226 = vsel %vm888, %v1083, 0
        %1228 = vmatprep.subr.bf16.mxu0 0
        %1229 = vmatpush1.bf16.msra.mxu0 %v1226
        %1230 = vmatprep.subr.bf16.mxu0 0
        %1231 = vmatpush1.bf16.msra.mxu0 0
        %1232 = vmatprep.subr.bf16.mxu0 0
        %1233 = vmatpush1.bf16.msra.mxu0 0
        %1234 = vmatprep.subr.bf16.mxu0 0
        %1235 = vmatpush1.bf16.msra.mxu0 0
        %1236 = vmatprep.subr.bf16.mxu0 0
        %1237 = vmatpush1.bf16.msra.mxu0 0
        %1238 = vmatprep.subr.bf16.mxu0 0
        %1239 = vmatpush1.bf16.msra.mxu0 0
        %1240 = vmatprep.subr.bf16.mxu0 0
        %1241 = vmatpush1.bf16.msra.mxu0 0
        %1242 = vmatprep.subr.bf16.mxu0 0
        %1243 = vmatpush1.bf16.msra.mxu0 0
        %1244 = vmatprep.subr.bf16.mxu0 0
        %1245 = vmatpush1.bf16.msra.mxu0 0
        %1246 = vmatprep.subr.bf16.mxu0 0
        %1247 = vmatpush1.bf16.msra.mxu0 0
        %1248 = vmatprep.subr.bf16.mxu0 0
        %1249 = vmatpush1.bf16.msra.mxu0 0
        %1250 = vmatprep.subr.bf16.mxu0 0
        %1251 = vmatpush1.bf16.msra.mxu0 0
        %1252 = vmatprep.subr.bf16.mxu0 0
        %1253 = vmatpush1.bf16.msra.mxu0 0
        %1254 = vmatprep.subr.bf16.mxu0 0
        %1255 = vmatpush1.bf16.msra.mxu0 0
        %1256 = vmatprep.subr.bf16.mxu0 0
        %1257 = vmatpush1.bf16.msra.mxu0 0
        %1258 = vmatprep.subr.bf16.mxu0 0
        %1259 = vmatpush1.bf16.msra.mxu0 0
        %1260 = vmatprep.mubr.bf16.mxu0 0
        %1261 = vmatmul.mubr.bf16.gmra.mrb[0].mxu0 %v1223
        %v1262 = vpop.f32.mrb[0].mxu0
        %v1263 = vadd.f32 0.0, %v1262
        %v1264 = vpop.f32.mrb[0].mxu0
        %v1265 = vpop.f32.mrb[0].mxu0
        %v1266 = vpop.f32.mrb[0].mxu0
        %1267 = vdwg.mxu0
        %v1268 = vsel %vm390, %v1125, 0.0
        %v1269 = vsel %vm390, %v1171, 0.0
        %v1270 = vadd.f32 %v1268, %v1269
        %v1271 = vsel %vm390, %v1217, 0.0
        %v1272 = vadd.f32 %v1270, %v1271
        %v1273 = vsel %vm390, %v1263, 0.0
        %v1274 = vadd.f32 %v1272, %v1273
        %v1275 = vadd.f32 %v370, %v1274
        %v1276 = vld [vmem:[%s6] sm:$0x1]
        %v1277 = vmul.f32 %v1275, %v1275
        %v1278 = vsel %vm390, %v1277, 0.0
        %1279 = vadd.xlane.f32.xlu0 %v1278
        %v1280 = vpop.xlane.xlu0 %1279
        %v1281 = vmul.f32 %v1280, %v394
        %v1282 = vadd.f32 %v1281, 1e-06
        %v1283 = vrsqrt.pop %v1282
        %v1284 = vmul.f32 %v1275, %v1283
        %v1286 = vlaneseq
        %v1287 = vshrl.u32 %v1286, 7
        %v1288 = vsub.s32 0, %v1287
        %v1289 = vrot.slane %v1276, %v1288
        %v1291 = vmul.f32 %v1284, %v1289
        %v1292 = vpack.c.bf16 %v1291, %v1291
        %v1293 = vld [vmem:[%s7] sm:$0xf]
        %v1294 = vld [vmem:[%s7 + $0x4] sm:$0xf]
        %v1295 = vld [vmem:[%s7 + $0x8] sm:$0xf]
        %v1296 = vld [vmem:[%s7 + $0xc] sm:$0xf]
        %v1301 = vunpack.c.l.b16 %v1293
        %v1302 = vunpack.c.l.b16 %v1294
        %v1303 = vunpack.c.l.b16 %v1295
        %v1304 = vunpack.c.l.b16 %v1296
        %v1305 = vpack.c.b16 %v1302, %v1301
        %v1306 = vpack.c.b16 %v1304, %v1303
        %v1310 = vsel %vm390, %v1292, 0
        %1312 = vmatprep.subr.bf16.mxu0 0
        %1313 = vmatpush1.bf16.msra.mxu0 %v1305
        %1314 = vmatprep.subr.bf16.mxu0 0
        %1315 = vmatpush1.bf16.msra.mxu0 %v1306
        %1316 = vmatprep.subr.bf16.mxu0 0
        %1317 = vmatpush1.bf16.msra.mxu0 0
        %1318 = vmatprep.subr.bf16.mxu0 0
        %1319 = vmatpush1.bf16.msra.mxu0 0
        %1320 = vmatprep.subr.bf16.mxu0 0
        %1321 = vmatpush1.bf16.msra.mxu0 0
        %1322 = vmatprep.subr.bf16.mxu0 0
        %1323 = vmatpush1.bf16.msra.mxu0 0
        %1324 = vmatprep.subr.bf16.mxu0 0
        %1325 = vmatpush1.bf16.msra.mxu0 0
        %1326 = vmatprep.subr.bf16.mxu0 0
        %1327 = vmatpush1.bf16.msra.mxu0 0
        %1328 = vmatprep.subr.bf16.mxu0 0
        %1329 = vmatpush1.bf16.msra.mxu0 0
        %1330 = vmatprep.subr.bf16.mxu0 0
        %1331 = vmatpush1.bf16.msra.mxu0 0
        %1332 = vmatprep.subr.bf16.mxu0 0
        %1333 = vmatpush1.bf16.msra.mxu0 0
        %1334 = vmatprep.subr.bf16.mxu0 0
        %1335 = vmatpush1.bf16.msra.mxu0 0
        %1336 = vmatprep.subr.bf16.mxu0 0
        %1337 = vmatpush1.bf16.msra.mxu0 0
        %1338 = vmatprep.subr.bf16.mxu0 0
        %1339 = vmatpush1.bf16.msra.mxu0 0
        %1340 = vmatprep.subr.bf16.mxu0 0
        %1341 = vmatpush1.bf16.msra.mxu0 0
        %1342 = vmatprep.subr.bf16.mxu0 0
        %1343 = vmatpush1.bf16.msra.mxu0 0
        %1344 = vmatprep.mubr.bf16.mxu0 0
        %1345 = vmatmul.mubr.bf16.gmra.mrb[0].mxu0 %v1310
        %v1346 = vpop.f32.mrb[0].mxu0
        %v1347 = vadd.f32 0.0, %v1346
        %v1348 = vpop.f32.mrb[0].mxu0
        %v1349 = vpop.f32.mrb[0].mxu0
        %v1350 = vpop.f32.mrb[0].mxu0
        %1351 = vdwg.mxu0
        %v1352 = vmax.f32 %v1347, 0.0
        %v1353 = vpack.c.bf16 %v1352, %v1352
        %v1354 = vld [vmem:[%s8] sm:$0xf]
        %v1355 = vld [vmem:[%s8 + $0x4] sm:$0xf]
        %v1356 = vld [vmem:[%s8 + $0x8] sm:$0xf]
        %v1357 = vld [vmem:[%s8 + $0xc] sm:$0xf]
        %v1358 = vld [vmem:[%s8 + $0x10] sm:$0xf]
        %v1359 = vld [vmem:[%s8 + $0x14] sm:$0xf]
        %v1360 = vld [vmem:[%s8 + $0x18] sm:$0xf]
        %v1361 = vld [vmem:[%s8 + $0x1c] sm:$0xf]
        %v1370 = vunpack.c.l.b16 %v1354
        %v1371 = vunpack.c.l.b16 %v1355
        %v1372 = vunpack.c.l.b16 %v1356
        %v1373 = vunpack.c.l.b16 %v1357
        %v1374 = vunpack.c.l.b16 %v1358
        %v1375 = vunpack.c.l.b16 %v1359
        %v1376 = vunpack.c.l.b16 %v1360
        %v1377 = vunpack.c.l.b16 %v1361
        %v1378 = vpack.c.b16 %v1371, %v1370
        %v1379 = vpack.c.b16 %v1373, %v1372
        %v1380 = vpack.c.b16 %v1375, %v1374
        %v1381 = vpack.c.b16 %v1377, %v1376
        %vm1386 = vcmask 523264
        %v1388 = vsel %vm1386, %v1353, 0
        %1390 = vmatprep.subr.bf16.mxu0 0
        %1391 = vmatpush1.bf16.msra.mxu0 %v1378
        %1392 = vmatprep.subr.bf16.mxu0 0
        %1393 = vmatpush1.bf16.msra.mxu0 %v1379
        %1394 = vmatprep.subr.bf16.mxu0 0
        %1395 = vmatpush1.bf16.msra.mxu0 %v1380
        %1396 = vmatprep.subr.bf16.mxu0 0
        %1397 = vmatpush1.bf16.msra.mxu0 %v1381
        %1398 = vmatprep.subr.bf16.mxu0 0
        %1399 = vmatpush1.bf16.msra.mxu0 0
        %1400 = vmatprep.subr.bf16.mxu0 0
        %1401 = vmatpush1.bf16.msra.mxu0 0
        %1402 = vmatprep.subr.bf16.mxu0 0
        %1403 = vmatpush1.bf16.msra.mxu0 0
        %1404 = vmatprep.subr.bf16.mxu0 0
        %1405 = vmatpush1.bf16.msra.mxu0 0
        %1406 = vmatprep.subr.bf16.mxu0 0
        %1407 = vmatpush1.bf16.msra.mxu0 0
        %1408 = vmatprep.subr.bf16.mxu0 0
        %1409 = vmatpush1.bf16.msra.mxu0 0
        %1410 = vmatprep.subr.bf16.mxu0 0
        %1411 = vmatpush1.bf16.msra.mxu0 0
        %1412 = vmatprep.subr.bf16.mxu0 0
        %1413 = vmatpush1.bf16.msra.mxu0 0
        %1414 = vmatprep.subr.bf16.mxu0 0
        %1415 = vmatpush1.bf16.msra.mxu0 0
        %1416 = vmatprep.subr.bf16.mxu0 0
        %1417 = vmatpush1.bf16.msra.mxu0 0
        %1418 = vmatprep.subr.bf16.mxu0 0
        %1419 = vmatpush1.bf16.msra.mxu0 0
        %1420 = vmatprep.subr.bf16.mxu0 0
        %1421 = vmatpush1.bf16.msra.mxu0 0
        %1422 = vmatprep.mubr.bf16.mxu0 0
        %1423 = vmatmul.mubr.bf16.gmra.mrb[0].mxu0 %v1388
        %v1424 = vpop.f32.mrb[0].mxu0
        %v1425 = vadd.f32 0.0, %v1424
        %v1426 = vpop.f32.mrb[0].mxu0
        %v1427 = vpop.f32.mrb[0].mxu0
        %v1428 = vpop.f32.mrb[0].mxu0
        %1429 = vdwg.mxu0
        %v1430 = vadd.f32 %v1275, %v1425
        %s1431 = scalar_lea.vmem %s3, 1
        %v1432 = vld [vmem:[%s1431] sm:$0x1]
        %v1433 = vmul.f32 %v1430, %v1430
        %v1434 = vsel %vm390, %v1433, 0.0
        %1435 = vadd.xlane.f32.xlu0 %v1434
        %v1436 = vpop.xlane.xlu0 %1435
        %v1437 = vmul.f32 %v1436, %v394
        %v1438 = vadd.f32 %v1437, 1e-06
        %v1439 = vrsqrt.pop %v1438
        %v1440 = vmul.f32 %v1430, %v1439
        %v1442 = vlaneseq
        %v1443 = vshrl.u32 %v1442, 7
        %v1444 = vsub.s32 0, %v1443
        %v1445 = vrot.slane %v1432, %v1444
        %v1447 = vmul.f32 %v1440, %v1445
        %v1448 = vpack.c.bf16 %v1447, %v1447
        %s1449 = scalar_lea.vmem %s4, 64
        %v1450 = vld [vmem:[%s1449] sm:$0xf]
        %v1451 = vld [vmem:[%s1449 + $0x4] sm:$0xf]
        %v1452 = vld [vmem:[%s1449 + $0x8] sm:$0xf]
        %v1453 = vld [vmem:[%s1449 + $0xc] sm:$0xf]
        %v1454 = vld [vmem:[%s1449 + $0x10] sm:$0xf]
        %v1455 = vld [vmem:[%s1449 + $0x14] sm:$0xf]
        %v1456 = vld [vmem:[%s1449 + $0x18] sm:$0xf]
        %v1457 = vld [vmem:[%s1449 + $0x1c] sm:$0xf]
        %v1458 = vld [vmem:[%s1449 + $0x20] sm:$0xf]
        %v1459 = vld [vmem:[%s1449 + $0x24] sm:$0xf]
        %v1460 = vld [vmem:[%s1449 + $0x28] sm:$0xf]
        %v1461 = vld [vmem:[%s1449 + $0x2c] sm:$0xf]
        %v1462 = vld [vmem:[%s1449 + $0x30] sm:$0xf]
        %v1463 = vld [vmem:[%s1449 + $0x34] sm:$0xf]
        %v1464 = vld [vmem:[%s1449 + $0x38] sm:$0xf]
        %v1465 = vld [vmem:[%s1449 + $0x3c] sm:$0xf]
        %v1470 = vunpack.c.l.b16 %v1450
        %v1471 = vunpack.c.l.b16 %v1451
        %v1472 = vunpack.c.l.b16 %v1452
        %v1473 = vunpack.c.l.b16 %v1453
        %v1474 = vpack.c.b16 %v1471, %v1470
        %v1475 = vpack.c.b16 %v1473, %v1472
        %v1479 = vsel %vm390, %v1448, 0
        %1481 = vmatprep.subr.bf16.mxu0 0
        %1482 = vmatpush1.bf16.msra.mxu0 %v1474
        %1483 = vmatprep.subr.bf16.mxu0 0
        %1484 = vmatpush1.bf16.msra.mxu0 %v1475
        %1485 = vmatprep.subr.bf16.mxu0 0
        %1486 = vmatpush1.bf16.msra.mxu0 0
        %1487 = vmatprep.subr.bf16.mxu0 0
        %1488 = vmatpush1.bf16.msra.mxu0 0
        %1489 = vmatprep.subr.bf16.mxu0 0
        %1490 = vmatpush1.bf16.msra.mxu0 0
        %1491 = vmatprep.subr.bf16.mxu0 0
        %1492 = vmatpush1.bf16.msra.mxu0 0
        %1493 = vmatprep.subr.bf16.mxu0 0
        %1494 = vmatpush1.bf16.msra.mxu0 0
        %1495 = vmatprep.subr.bf16.mxu0 0
        %1496 = vmatpush1.bf16.msra.mxu0 0
        %1497 = vmatprep.subr.bf16.mxu0 0
        %1498 = vmatpush1.bf16.msra.mxu0 0
        %1499 = vmatprep.subr.bf16.mxu0 0
        %1500 = vmatpush1.bf16.msra.mxu0 0
        %1501 = vmatprep.subr.bf16.mxu0 0
        %1502 = vmatpush1.bf16.msra.mxu0 0
        %1503 = vmatprep.subr.bf16.mxu0 0
        %1504 = vmatpush1.bf16.msra.mxu0 0
        %1505 = vmatprep.subr.bf16.mxu0 0
        %1506 = vmatpush1.bf16.msra.mxu0 0
        %1507 = vmatprep.subr.bf16.mxu0 0
        %1508 = vmatpush1.bf16.msra.mxu0 0
        %1509 = vmatprep.subr.bf16.mxu0 0
        %1510 = vmatpush1.bf16.msra.mxu0 0
        %1511 = vmatprep.subr.bf16.mxu0 0
        %1512 = vmatpush1.bf16.msra.mxu0 0
        %1513 = vmatprep.mubr.bf16.mxu0 0
        %1514 = vmatmul.mubr.bf16.gmra.mrb[0].mxu0 %v1479
        %v1515 = vpop.f32.mrb[0].mxu0
        %v1516 = vadd.f32 0.0, %v1515
        %v1517 = vpop.f32.mrb[0].mxu0
        %v1518 = vpop.f32.mrb[0].mxu0
        %v1519 = vpop.f32.mrb[0].mxu0
        %1520 = vdwg.mxu0
        %v1525 = vunpack.c.l.b16 %v1454
        %v1526 = vunpack.c.l.b16 %v1455
        %v1527 = vunpack.c.l.b16 %v1456
        %v1528 = vunpack.c.l.b16 %v1457
        %v1529 = vpack.c.b16 %v1526, %v1525
        %v1530 = vpack.c.b16 %v1528, %v1527
        %1533 = vmatprep.subr.bf16.mxu0 0
        %1534 = vmatpush1.bf16.msra.mxu0 %v1529
        %1535 = vmatprep.subr.bf16.mxu0 0
        %1536 = vmatpush1.bf16.msra.mxu0 %v1530
        %1537 = vmatprep.subr.bf16.mxu0 0
        %1538 = vmatpush1.bf16.msra.mxu0 0
        %1539 = vmatprep.subr.bf16.mxu0 0
        %1540 = vmatpush1.bf16.msra.mxu0 0
        %1541 = vmatprep.subr.bf16.mxu0 0
        %1542 = vmatpush1.bf16.msra.mxu0 0
        %1543 = vmatprep.subr.bf16.mxu0 0
        %1544 = vmatpush1.bf16.msra.mxu0 0
        %1545 = vmatprep.subr.bf16.mxu0 0
        %1546 = vmatpush1.bf16.msra.mxu0 0
        %1547 = vmatprep.subr.bf16.mxu0 0
        %1548 = vmatpush1.bf16.msra.mxu0 0
        %1549 = vmatprep.subr.bf16.mxu0 0
        %1550 = vmatpush1.bf16.msra.mxu0 0
        %1551 = vmatprep.subr.bf16.mxu0 0
        %1552 = vmatpush1.bf16.msra.mxu0 0
        %1553 = vmatprep.subr.bf16.mxu0 0
        %1554 = vmatpush1.bf16.msra.mxu0 0
        %1555 = vmatprep.subr.bf16.mxu0 0
        %1556 = vmatpush1.bf16.msra.mxu0 0
        %1557 = vmatprep.subr.bf16.mxu0 0
        %1558 = vmatpush1.bf16.msra.mxu0 0
        %1559 = vmatprep.subr.bf16.mxu0 0
        %1560 = vmatpush1.bf16.msra.mxu0 0
        %1561 = vmatprep.subr.bf16.mxu0 0
        %1562 = vmatpush1.bf16.msra.mxu0 0
        %1563 = vmatprep.subr.bf16.mxu0 0
        %1564 = vmatpush1.bf16.msra.mxu0 0
        %1565 = vmatprep.mubr.bf16.mxu0 0
        %1566 = vmatmul.mubr.bf16.gmra.mrb[0].mxu0 %v1479
        %v1567 = vpop.f32.mrb[0].mxu0
        %v1568 = vadd.f32 0.0, %v1567
        %v1569 = vpop.f32.mrb[0].mxu0
        %v1570 = vpop.f32.mrb[0].mxu0
        %v1571 = vpop.f32.mrb[0].mxu0
        %1572 = vdwg.mxu0
        %v1577 = vunpack.c.l.b16 %v1458
        %v1578 = vunpack.c.l.b16 %v1459
        %v1579 = vunpack.c.l.b16 %v1460
        %v1580 = vunpack.c.l.b16 %v1461
        %v1581 = vpack.c.b16 %v1578, %v1577
        %v1582 = vpack.c.b16 %v1580, %v1579
        %1585 = vmatprep.subr.bf16.mxu0 0
        %1586 = vmatpush1.bf16.msra.mxu0 %v1581
        %1587 = vmatprep.subr.bf16.mxu0 0
        %1588 = vmatpush1.bf16.msra.mxu0 %v1582
        %1589 = vmatprep.subr.bf16.mxu0 0
        %1590 = vmatpush1.bf16.msra.mxu0 0
        %1591 = vmatprep.subr.bf16.mxu0 0
        %1592 = vmatpush1.bf16.msra.mxu0 0
        %1593 = vmatprep.subr.bf16.mxu0 0
        %1594 = vmatpush1.bf16.msra.mxu0 0
        %1595 = vmatprep.subr.bf16.mxu0 0
        %1596 = vmatpush1.bf16.msra.mxu0 0
        %1597 = vmatprep.subr.bf16.mxu0 0
        %1598 = vmatpush1.bf16.msra.mxu0 0
        %1599 = vmatprep.subr.bf16.mxu0 0
        %1600 = vmatpush1.bf16.msra.mxu0 0
        %1601 = vmatprep.subr.bf16.mxu0 0
        %1602 = vmatpush1.bf16.msra.mxu0 0
        %1603 = vmatprep.subr.bf16.mxu0 0
        %1604 = vmatpush1.bf16.msra.mxu0 0
        %1605 = vmatprep.subr.bf16.mxu0 0
        %1606 = vmatpush1.bf16.msra.mxu0 0
        %1607 = vmatprep.subr.bf16.mxu0 0
        %1608 = vmatpush1.bf16.msra.mxu0 0
        %1609 = vmatprep.subr.bf16.mxu0 0
        %1610 = vmatpush1.bf16.msra.mxu0 0
        %1611 = vmatprep.subr.bf16.mxu0 0
        %1612 = vmatpush1.bf16.msra.mxu0 0
        %1613 = vmatprep.subr.bf16.mxu0 0
        %1614 = vmatpush1.bf16.msra.mxu0 0
        %1615 = vmatprep.subr.bf16.mxu0 0
        %1616 = vmatpush1.bf16.msra.mxu0 0
        %1617 = vmatprep.mubr.bf16.mxu0 0
        %1618 = vmatmul.mubr.bf16.gmra.mrb[0].mxu0 %v1479
        %v1619 = vpop.f32.mrb[0].mxu0
        %v1620 = vadd.f32 0.0, %v1619
        %v1621 = vpop.f32.mrb[0].mxu0
        %v1622 = vpop.f32.mrb[0].mxu0
        %v1623 = vpop.f32.mrb[0].mxu0
        %1624 = vdwg.mxu0
        %v1629 = vunpack.c.l.b16 %v1462
        %v1630 = vunpack.c.l.b16 %v1463
        %v1631 = vunpack.c.l.b16 %v1464
        %v1632 = vunpack.c.l.b16 %v1465
        %v1633 = vpack.c.b16 %v1630, %v1629
        %v1634 = vpack.c.b16 %v1632, %v1631
        %1637 = vmatprep.subr.bf16.mxu0 0
        %1638 = vmatpush1.bf16.msra.mxu0 %v1633
        %1639 = vmatprep.subr.bf16.mxu0 0
        %1640 = vmatpush1.bf16.msra.mxu0 %v1634
        %1641 = vmatprep.subr.bf16.mxu0 0
        %1642 = vmatpush1.bf16.msra.mxu0 0
        %1643 = vmatprep.subr.bf16.mxu0 0
        %1644 = vmatpush1.bf16.msra.mxu0 0
        %1645 = vmatprep.subr.bf16.mxu0 0
        %1646 = vmatpush1.bf16.msra.mxu0 0
        %1647 = vmatprep.subr.bf16.mxu0 0
        %1648 = vmatpush1.bf16.msra.mxu0 0
        %1649 = vmatprep.subr.bf16.mxu0 0
        %1650 = vmatpush1.bf16.msra.mxu0 0
        %1651 = vmatprep.subr.bf16.mxu0 0
        %1652 = vmatpush1.bf16.msra.mxu0 0
        %1653 = vmatprep.subr.bf16.mxu0 0
        %1654 = vmatpush1.bf16.msra.mxu0 0
        %1655 = vmatprep.subr.bf16.mxu0 0
        %1656 = vmatpush1.bf16.msra.mxu0 0
        %1657 = vmatprep.subr.bf16.mxu0 0
        %1658 = vmatpush1.bf16.msra.mxu0 0
        %1659 = vmatprep.subr.bf16.mxu0 0
        %1660 = vmatpush1.bf16.msra.mxu0 0
        %1661 = vmatprep.subr.bf16.mxu0 0
        %1662 = vmatpush1.bf16.msra.mxu0 0
        %1663 = vmatprep.subr.bf16.mxu0 0
        %1664 = vmatpush1.bf16.msra.mxu0 0
        %1665 = vmatprep.subr.bf16.mxu0 0
        %1666 = vmatpush1.bf16.msra.mxu0 0
        %1667 = vmatprep.subr.bf16.mxu0 0
        %1668 = vmatpush1.bf16.msra.mxu0 0
        %1669 = vmatprep.mubr.bf16.mxu0 0
        %1670 = vmatmul.mubr.bf16.gmra.mrb[0].mxu0 %v1479
        %v1671 = vpop.f32.mrb[0].mxu0
        %v1672 = vadd.f32 0.0, %v1671
        %v1673 = vpop.f32.mrb[0].mxu0
        %v1674 = vpop.f32.mrb[0].mxu0
        %v1675 = vpop.f32.mrb[0].mxu0
        %1676 = vdwg.mxu0
        %v1677 = vpack.c.bf16 %v1516, %v1516
        %v1678 = vpack.c.bf16 %v1568, %v1568
        %v1679 = vpack.c.bf16 %v1620, %v1620
        %v1680 = vpack.c.bf16 %v1672, %v1672
        %1682 = vrot.lane.b32.xlu0 %v1677, 120
        %v1683 = vpop.permute.xlu0 %1682
        %v1685 = vsel %vm641, %v1677, 0
        %v1688 = vsel %vm641, %v1683, 0
        %1690 = vmatprep.subr.bf16.mxu0 0
        %1691 = vmatpush1.bf16.xpose.msra.mxu0 %v1688
        %1692 = vmatprep.subr.bf16.mxu0 0
        %1693 = vmatpush1.bf16.xpose.msra.mxu0 0
        %1694 = vmatprep.subr.bf16.mxu0 0
        %1695 = vmatpush1.bf16.xpose.msra.mxu0 0
        %1696 = vmatprep.subr.bf16.mxu0 0
        %1697 = vmatpush1.bf16.xpose.msra.mxu0 0
        %1698 = vmatprep.subr.bf16.mxu0 0
        %1699 = vmatpush1.bf16.xpose.msra.mxu0 0
        %1700 = vmatprep.subr.bf16.mxu0 0
        %1701 = vmatpush1.bf16.xpose.msra.mxu0 0
        %1702 = vmatprep.subr.bf16.mxu0 0
        %1703 = vmatpush1.bf16.xpose.msra.mxu0 0
        %1704 = vmatprep.subr.bf16.mxu0 0
        %1705 = vmatpush1.bf16.xpose.msra.mxu0 0
        %1706 = vmatprep.subr.bf16.mxu0 0
        %1707 = vmatpush1.bf16.xpose.msra.mxu0 0
        %1708 = vmatprep.subr.bf16.mxu0 0
        %1709 = vmatpush1.bf16.xpose.msra.mxu0 0
        %1710 = vmatprep.subr.bf16.mxu0 0
        %1711 = vmatpush1.bf16.xpose.msra.mxu0 0
        %1712 = vmatprep.subr.bf16.mxu0 0
        %1713 = vmatpush1.bf16.xpose.msra.mxu0 0
        %1714 = vmatprep.subr.bf16.mxu0 0
        %1715 = vmatpush1.bf16.xpose.msra.mxu0 0
        %1716 = vmatprep.subr.bf16.mxu0 0
        %1717 = vmatpush1.bf16.xpose.msra.mxu0 0
        %1718 = vmatprep.subr.bf16.mxu0 0
        %1719 = vmatpush1.bf16.xpose.msra.mxu0 0
        %1720 = vmatprep.subr.bf16.mxu0 0
        %1721 = vmatpush1.bf16.xpose.msra.mxu0 0
        %1722 = vmatprep.mubr.bf16.mxu0 0
        %1723 = vmatmul.mubr.bf16.gmra.mrb[0].mxu0 %v1685
        %v1724 = vpop.f32.mrb[0].mxu0
        %v1725 = vadd.f32 %v384, %v1724
        %v1726 = vpop.f32.mrb[0].mxu0
        %v1727 = vpop.f32.mrb[0].mxu0
        %v1728 = vpop.f32.mrb[0].mxu0
        %1729 = vdwg.mxu0
        %1731 = vrot.lane.b32.xlu0 %v1678, 120
        %v1732 = vpop.permute.xlu0 %1731
        %v1734 = vsel %vm641, %v1678, 0
        %v1737 = vsel %vm641, %v1732, 0
        %1739 = vmatprep.subr.bf16.mxu0 0
        %1740 = vmatpush1.bf16.xpose.msra.mxu0 %v1737
        %1741 = vmatprep.subr.bf16.mxu0 0
        %1742 = vmatpush1.bf16.xpose.msra.mxu0 0
        %1743 = vmatprep.subr.bf16.mxu0 0
        %1744 = vmatpush1.bf16.xpose.msra.mxu0 0
        %1745 = vmatprep.subr.bf16.mxu0 0
        %1746 = vmatpush1.bf16.xpose.msra.mxu0 0
        %1747 = vmatprep.subr.bf16.mxu0 0
        %1748 = vmatpush1.bf16.xpose.msra.mxu0 0
        %1749 = vmatprep.subr.bf16.mxu0 0
        %1750 = vmatpush1.bf16.xpose.msra.mxu0 0
        %1751 = vmatprep.subr.bf16.mxu0 0
        %1752 = vmatpush1.bf16.xpose.msra.mxu0 0
        %1753 = vmatprep.subr.bf16.mxu0 0
        %1754 = vmatpush1.bf16.xpose.msra.mxu0 0
        %1755 = vmatprep.subr.bf16.mxu0 0
        %1756 = vmatpush1.bf16.xpose.msra.mxu0 0
        %1757 = vmatprep.subr.bf16.mxu0 0
        %1758 = vmatpush1.bf16.xpose.msra.mxu0 0
        %1759 = vmatprep.subr.bf16.mxu0 0
        %1760 = vmatpush1.bf16.xpose.msra.mxu0 0
        %1761 = vmatprep.subr.bf16.mxu0 0
        %1762 = vmatpush1.bf16.xpose.msra.mxu0 0
        %1763 = vmatprep.subr.bf16.mxu0 0
        %1764 = vmatpush1.bf16.xpose.msra.mxu0 0
        %1765 = vmatprep.subr.bf16.mxu0 0
        %1766 = vmatpush1.bf16.xpose.msra.mxu0 0
        %1767 = vmatprep.subr.bf16.mxu0 0
        %1768 = vmatpush1.bf16.xpose.msra.mxu0 0
        %1769 = vmatprep.subr.bf16.mxu0 0
        %1770 = vmatpush1.bf16.xpose.msra.mxu0 0
        %1771 = vmatprep.mubr.bf16.mxu0 0
        %1772 = vmatmul.mubr.bf16.gmra.mrb[0].mxu0 %v1734
        %v1773 = vpop.f32.mrb[0].mxu0
        %v1774 = vadd.f32 %v385, %v1773
        %v1775 = vpop.f32.mrb[0].mxu0
        %v1776 = vpop.f32.mrb[0].mxu0
        %v1777 = vpop.f32.mrb[0].mxu0
        %1778 = vdwg.mxu0
        %1780 = vrot.lane.b32.xlu0 %v1679, 120
        %v1781 = vpop.permute.xlu0 %1780
        %v1783 = vsel %vm641, %v1679, 0
        %v1786 = vsel %vm641, %v1781, 0
        %1788 = vmatprep.subr.bf16.mxu0 0
        %1789 = vmatpush1.bf16.xpose.msra.mxu0 %v1786
        %1790 = vmatprep.subr.bf16.mxu0 0
        %1791 = vmatpush1.bf16.xpose.msra.mxu0 0
        %1792 = vmatprep.subr.bf16.mxu0 0
        %1793 = vmatpush1.bf16.xpose.msra.mxu0 0
        %1794 = vmatprep.subr.bf16.mxu0 0
        %1795 = vmatpush1.bf16.xpose.msra.mxu0 0
        %1796 = vmatprep.subr.bf16.mxu0 0
        %1797 = vmatpush1.bf16.xpose.msra.mxu0 0
        %1798 = vmatprep.subr.bf16.mxu0 0
        %1799 = vmatpush1.bf16.xpose.msra.mxu0 0
        %1800 = vmatprep.subr.bf16.mxu0 0
        %1801 = vmatpush1.bf16.xpose.msra.mxu0 0
        %1802 = vmatprep.subr.bf16.mxu0 0
        %1803 = vmatpush1.bf16.xpose.msra.mxu0 0
        %1804 = vmatprep.subr.bf16.mxu0 0
        %1805 = vmatpush1.bf16.xpose.msra.mxu0 0
        %1806 = vmatprep.subr.bf16.mxu0 0
        %1807 = vmatpush1.bf16.xpose.msra.mxu0 0
        %1808 = vmatprep.subr.bf16.mxu0 0
        %1809 = vmatpush1.bf16.xpose.msra.mxu0 0
        %1810 = vmatprep.subr.bf16.mxu0 0
        %1811 = vmatpush1.bf16.xpose.msra.mxu0 0
        %1812 = vmatprep.subr.bf16.mxu0 0
        %1813 = vmatpush1.bf16.xpose.msra.mxu0 0
        %1814 = vmatprep.subr.bf16.mxu0 0
        %1815 = vmatpush1.bf16.xpose.msra.mxu0 0
        %1816 = vmatprep.subr.bf16.mxu0 0
        %1817 = vmatpush1.bf16.xpose.msra.mxu0 0
        %1818 = vmatprep.subr.bf16.mxu0 0
        %1819 = vmatpush1.bf16.xpose.msra.mxu0 0
        %1820 = vmatprep.mubr.bf16.mxu0 0
        %1821 = vmatmul.mubr.bf16.gmra.mrb[0].mxu0 %v1783
        %v1822 = vpop.f32.mrb[0].mxu0
        %v1823 = vadd.f32 %v386, %v1822
        %v1824 = vpop.f32.mrb[0].mxu0
        %v1825 = vpop.f32.mrb[0].mxu0
        %v1826 = vpop.f32.mrb[0].mxu0
        %1827 = vdwg.mxu0
        %1829 = vrot.lane.b32.xlu0 %v1680, 120
        %v1830 = vpop.permute.xlu0 %1829
        %v1832 = vsel %vm641, %v1680, 0
        %v1835 = vsel %vm641, %v1830, 0
        %1837 = vmatprep.subr.bf16.mxu0 0
        %1838 = vmatpush1.bf16.xpose.msra.mxu0 %v1835
        %1839 = vmatprep.subr.bf16.mxu0 0
        %1840 = vmatpush1.bf16.xpose.msra.mxu0 0
        %1841 = vmatprep.subr.bf16.mxu0 0
        %1842 = vmatpush1.bf16.xpose.msra.mxu0 0
        %1843 = vmatprep.subr.bf16.mxu0 0
        %1844 = vmatpush1.bf16.xpose.msra.mxu0 0
        %1845 = vmatprep.subr.bf16.mxu0 0
        %1846 = vmatpush1.bf16.xpose.msra.mxu0 0
        %1847 = vmatprep.subr.bf16.mxu0 0
        %1848 = vmatpush1.bf16.xpose.msra.mxu0 0
        %1849 = vmatprep.subr.bf16.mxu0 0
        %1850 = vmatpush1.bf16.xpose.msra.mxu0 0
        %1851 = vmatprep.subr.bf16.mxu0 0
        %1852 = vmatpush1.bf16.xpose.msra.mxu0 0
        %1853 = vmatprep.subr.bf16.mxu0 0
        %1854 = vmatpush1.bf16.xpose.msra.mxu0 0
        %1855 = vmatprep.subr.bf16.mxu0 0
        %1856 = vmatpush1.bf16.xpose.msra.mxu0 0
        %1857 = vmatprep.subr.bf16.mxu0 0
        %1858 = vmatpush1.bf16.xpose.msra.mxu0 0
        %1859 = vmatprep.subr.bf16.mxu0 0
        %1860 = vmatpush1.bf16.xpose.msra.mxu0 0
        %1861 = vmatprep.subr.bf16.mxu0 0
        %1862 = vmatpush1.bf16.xpose.msra.mxu0 0
        %1863 = vmatprep.subr.bf16.mxu0 0
        %1864 = vmatpush1.bf16.xpose.msra.mxu0 0
        %1865 = vmatprep.subr.bf16.mxu0 0
        %1866 = vmatpush1.bf16.xpose.msra.mxu0 0
        %1867 = vmatprep.subr.bf16.mxu0 0
        %1868 = vmatpush1.bf16.xpose.msra.mxu0 0
        %1869 = vmatprep.mubr.bf16.mxu0 0
        %1870 = vmatmul.mubr.bf16.gmra.mrb[0].mxu0 %v1832
        %v1871 = vpop.f32.mrb[0].mxu0
        %v1872 = vadd.f32 %v387, %v1871
        %v1873 = vpop.f32.mrb[0].mxu0
        %v1874 = vpop.f32.mrb[0].mxu0
        %v1875 = vpop.f32.mrb[0].mxu0
        %1876 = vdwg.mxu0
        %v1877 = vsel %vm641, %v1725, -inf
        %1878 = vmax.xlane.f32.xlu0 %v1877
        %v1879 = vpop.xlane.xlu0 %1878
        %v1880 = vsel %vm641, %v1774, -inf
        %1881 = vmax.xlane.f32.xlu0 %v1880
        %v1882 = vpop.xlane.xlu0 %1881
        %v1883 = vsel %vm641, %v1823, -inf
        %1884 = vmax.xlane.f32.xlu0 %v1883
        %v1885 = vpop.xlane.xlu0 %1884
        %v1886 = vsel %vm641, %v1872, -inf
        %1887 = vmax.xlane.f32.xlu0 %v1886
        %v1888 = vpop.xlane.xlu0 %1887
        %v1889 = vsub.f32 %v1725, %v1879
        %v1890 = vsub.f32 %v1774, %v1882
        %v1891 = vsub.f32 %v1823, %v1885
        %v1892 = vsub.f32 %v1872, %v1888
        %v1893 = vmul.f32 %v1889, 1.442695
        %v1894 = vpow.pop %v1893
        %v1895 = vmul.f32 %v1890, 1.442695
        %v1896 = vpow.pop %v1895
        %v1897 = vmul.f32 %v1891, 1.442695
        %v1898 = vpow.pop %v1897
        %v1899 = vmul.f32 %v1892, 1.442695
        %v1900 = vpow.pop %v1899
        %v1901 = vsel %vm641, %v1894, 0.0
        %1902 = vadd.xlane.f32.xlu0 %v1901
        %v1903 = vpop.xlane.xlu0 %1902
        %v1904 = vsel %vm641, %v1896, 0.0
        %1905 = vadd.xlane.f32.xlu0 %v1904
        %v1906 = vpop.xlane.xlu0 %1905
        %v1907 = vsel %vm641, %v1898, 0.0
        %1908 = vadd.xlane.f32.xlu0 %v1907
        %v1909 = vpop.xlane.xlu0 %1908
        %v1910 = vsel %vm641, %v1900, 0.0
        %1911 = vadd.xlane.f32.xlu0 %v1910
        %v1912 = vpop.xlane.xlu0 %1911
        %v1913 = vrcp.pop %v1903
        %v1914 = vrcp.pop %v1906
        %v1915 = vrcp.pop %v1909
        %v1916 = vrcp.pop %v1912
        %v1917 = vmul.f32 %v1894, %v1913
        %v1918 = vmul.f32 %v1896, %v1914
        %v1919 = vmul.f32 %v1898, %v1915
        %v1920 = vmul.f32 %v1900, %v1916
        %v1921 = vpack.c.bf16 %v1917, %v1917
        %v1922 = vpack.c.bf16 %v1918, %v1918
        %v1923 = vpack.c.bf16 %v1919, %v1919
        %v1924 = vpack.c.bf16 %v1920, %v1920
        %1925 = vrot.lane.b32.xlu0 %v1677, 112
        %v1926 = vpop.permute.xlu0 %1925
        %v1928 = vsel %vm641, %v1921, 0
        %v1931 = vsel %vm888, %v1926, 0
        %1933 = vmatprep.subr.bf16.mxu0 0
        %1934 = vmatpush1.bf16.msra.mxu0 %v1931
        %1935 = vmatprep.subr.bf16.mxu0 0
        %1936 = vmatpush1.bf16.msra.mxu0 0
        %1937 = vmatprep.subr.bf16.mxu0 0
        %1938 = vmatpush1.bf16.msra.mxu0 0
        %1939 = vmatprep.subr.bf16.mxu0 0
        %1940 = vmatpush1.bf16.msra.mxu0 0
        %1941 = vmatprep.subr.bf16.mxu0 0
        %1942 = vmatpush1.bf16.msra.mxu0 0
        %1943 = vmatprep.subr.bf16.mxu0 0
        %1944 = vmatpush1.bf16.msra.mxu0 0
        %1945 = vmatprep.subr.bf16.mxu0 0
        %1946 = vmatpush1.bf16.msra.mxu0 0
        %1947 = vmatprep.subr.bf16.mxu0 0
        %1948 = vmatpush1.bf16.msra.mxu0 0
        %1949 = vmatprep.subr.bf16.mxu0 0
        %1950 = vmatpush1.bf16.msra.mxu0 0
        %1951 = vmatprep.subr.bf16.mxu0 0
        %1952 = vmatpush1.bf16.msra.mxu0 0
        %1953 = vmatprep.subr.bf16.mxu0 0
        %1954 = vmatpush1.bf16.msra.mxu0 0
        %1955 = vmatprep.subr.bf16.mxu0 0
        %1956 = vmatpush1.bf16.msra.mxu0 0
        %1957 = vmatprep.subr.bf16.mxu0 0
        %1958 = vmatpush1.bf16.msra.mxu0 0
        %1959 = vmatprep.subr.bf16.mxu0 0
        %1960 = vmatpush1.bf16.msra.mxu0 0
        %1961 = vmatprep.subr.bf16.mxu0 0
        %1962 = vmatpush1.bf16.msra.mxu0 0
        %1963 = vmatprep.subr.bf16.mxu0 0
        %1964 = vmatpush1.bf16.msra.mxu0 0
        %1965 = vmatprep.mubr.bf16.mxu0 0
        %1966 = vmatmul.mubr.bf16.gmra.mrb[0].mxu0 %v1928
        %v1967 = vpop.f32.mrb[0].mxu0
        %v1968 = vadd.f32 0.0, %v1967
        %v1969 = vpop.f32.mrb[0].mxu0
        %v1970 = vpop.f32.mrb[0].mxu0
        %v1971 = vpop.f32.mrb[0].mxu0
        %1972 = vdwg.mxu0
        %1973 = vrot.lane.b32.xlu0 %v1678, 112
        %v1974 = vpop.permute.xlu0 %1973
        %v1976 = vsel %vm641, %v1922, 0
        %v1979 = vsel %vm888, %v1974, 0
        %1981 = vmatprep.subr.bf16.mxu0 0
        %1982 = vmatpush1.bf16.msra.mxu0 %v1979
        %1983 = vmatprep.subr.bf16.mxu0 0
        %1984 = vmatpush1.bf16.msra.mxu0 0
        %1985 = vmatprep.subr.bf16.mxu0 0
        %1986 = vmatpush1.bf16.msra.mxu0 0
        %1987 = vmatprep.subr.bf16.mxu0 0
        %1988 = vmatpush1.bf16.msra.mxu0 0
        %1989 = vmatprep.subr.bf16.mxu0 0
        %1990 = vmatpush1.bf16.msra.mxu0 0
        %1991 = vmatprep.subr.bf16.mxu0 0
        %1992 = vmatpush1.bf16.msra.mxu0 0
        %1993 = vmatprep.subr.bf16.mxu0 0
        %1994 = vmatpush1.bf16.msra.mxu0 0
        %1995 = vmatprep.subr.bf16.mxu0 0
        %1996 = vmatpush1.bf16.msra.mxu0 0
        %1997 = vmatprep.subr.bf16.mxu0 0
        %1998 = vmatpush1.bf16.msra.mxu0 0
        %1999 = vmatprep.subr.bf16.mxu0 0
        %2000 = vmatpush1.bf16.msra.mxu0 0
        %2001 = vmatprep.subr.bf16.mxu0 0
        %2002 = vmatpush1.bf16.msra.mxu0 0
        %2003 = vmatprep.subr.bf16.mxu0 0
        %2004 = vmatpush1.bf16.msra.mxu0 0
        %2005 = vmatprep.subr.bf16.mxu0 0
        %2006 = vmatpush1.bf16.msra.mxu0 0
        %2007 = vmatprep.subr.bf16.mxu0 0
        %2008 = vmatpush1.bf16.msra.mxu0 0
        %2009 = vmatprep.subr.bf16.mxu0 0
        %2010 = vmatpush1.bf16.msra.mxu0 0
        %2011 = vmatprep.subr.bf16.mxu0 0
        %2012 = vmatpush1.bf16.msra.mxu0 0
        %2013 = vmatprep.mubr.bf16.mxu0 0
        %2014 = vmatmul.mubr.bf16.gmra.mrb[0].mxu0 %v1976
        %v2015 = vpop.f32.mrb[0].mxu0
        %v2016 = vadd.f32 0.0, %v2015
        %v2017 = vpop.f32.mrb[0].mxu0
        %v2018 = vpop.f32.mrb[0].mxu0
        %v2019 = vpop.f32.mrb[0].mxu0
        %2020 = vdwg.mxu0
        %2021 = vrot.lane.b32.xlu0 %v1679, 112
        %v2022 = vpop.permute.xlu0 %2021
        %v2024 = vsel %vm641, %v1923, 0
        %v2027 = vsel %vm888, %v2022, 0
        %2029 = vmatprep.subr.bf16.mxu0 0
        %2030 = vmatpush1.bf16.msra.mxu0 %v2027
        %2031 = vmatprep.subr.bf16.mxu0 0
        %2032 = vmatpush1.bf16.msra.mxu0 0
        %2033 = vmatprep.subr.bf16.mxu0 0
        %2034 = vmatpush1.bf16.msra.mxu0 0
        %2035 = vmatprep.subr.bf16.mxu0 0
        %2036 = vmatpush1.bf16.msra.mxu0 0
        %2037 = vmatprep.subr.bf16.mxu0 0
        %2038 = vmatpush1.bf16.msra.mxu0 0
        %2039 = vmatprep.subr.bf16.mxu0 0
        %2040 = vmatpush1.bf16.msra.mxu0 0
        %2041 = vmatprep.subr.bf16.mxu0 0
        %2042 = vmatpush1.bf16.msra.mxu0 0
        %2043 = vmatprep.subr.bf16.mxu0 0
        %2044 = vmatpush1.bf16.msra.mxu0 0
        %2045 = vmatprep.subr.bf16.mxu0 0
        %2046 = vmatpush1.bf16.msra.mxu0 0
        %2047 = vmatprep.subr.bf16.mxu0 0
        %2048 = vmatpush1.bf16.msra.mxu0 0
        %2049 = vmatprep.subr.bf16.mxu0 0
        %2050 = vmatpush1.bf16.msra.mxu0 0
        %2051 = vmatprep.subr.bf16.mxu0 0
        %2052 = vmatpush1.bf16.msra.mxu0 0
        %2053 = vmatprep.subr.bf16.mxu0 0
        %2054 = vmatpush1.bf16.msra.mxu0 0
        %2055 = vmatprep.subr.bf16.mxu0 0
        %2056 = vmatpush1.bf16.msra.mxu0 0
        %2057 = vmatprep.subr.bf16.mxu0 0
        %2058 = vmatpush1.bf16.msra.mxu0 0
        %2059 = vmatprep.subr.bf16.mxu0 0
        %2060 = vmatpush1.bf16.msra.mxu0 0
        %2061 = vmatprep.mubr.bf16.mxu0 0
        %2062 = vmatmul.mubr.bf16.gmra.mrb[0].mxu0 %v2024
        %v2063 = vpop.f32.mrb[0].mxu0
        %v2064 = vadd.f32 0.0, %v2063
        %v2065 = vpop.f32.mrb[0].mxu0
        %v2066 = vpop.f32.mrb[0].mxu0
        %v2067 = vpop.f32.mrb[0].mxu0
        %2068 = vdwg.mxu0
        %2069 = vrot.lane.b32.xlu0 %v1680, 112
        %v2070 = vpop.permute.xlu0 %2069
        %v2072 = vsel %vm641, %v1924, 0
        %v2075 = vsel %vm888, %v2070, 0
        %2077 = vmatprep.subr.bf16.mxu0 0
        %2078 = vmatpush1.bf16.msra.mxu0 %v2075
        %2079 = vmatprep.subr.bf16.mxu0 0
        %2080 = vmatpush1.bf16.msra.mxu0 0
        %2081 = vmatprep.subr.bf16.mxu0 0
        %2082 = vmatpush1.bf16.msra.mxu0 0
        %2083 = vmatprep.subr.bf16.mxu0 0
        %2084 = vmatpush1.bf16.msra.mxu0 0
        %2085 = vmatprep.subr.bf16.mxu0 0
        %2086 = vmatpush1.bf16.msra.mxu0 0
        %2087 = vmatprep.subr.bf16.mxu0 0
        %2088 = vmatpush1.bf16.msra.mxu0 0
        %2089 = vmatprep.subr.bf16.mxu0 0
        %2090 = vmatpush1.bf16.msra.mxu0 0
        %2091 = vmatprep.subr.bf16.mxu0 0
        %2092 = vmatpush1.bf16.msra.mxu0 0
        %2093 = vmatprep.subr.bf16.mxu0 0
        %2094 = vmatpush1.bf16.msra.mxu0 0
        %2095 = vmatprep.subr.bf16.mxu0 0
        %2096 = vmatpush1.bf16.msra.mxu0 0
        %2097 = vmatprep.subr.bf16.mxu0 0
        %2098 = vmatpush1.bf16.msra.mxu0 0
        %2099 = vmatprep.subr.bf16.mxu0 0
        %2100 = vmatpush1.bf16.msra.mxu0 0
        %2101 = vmatprep.subr.bf16.mxu0 0
        %2102 = vmatpush1.bf16.msra.mxu0 0
        %2103 = vmatprep.subr.bf16.mxu0 0
        %2104 = vmatpush1.bf16.msra.mxu0 0
        %2105 = vmatprep.subr.bf16.mxu0 0
        %2106 = vmatpush1.bf16.msra.mxu0 0
        %2107 = vmatprep.subr.bf16.mxu0 0
        %2108 = vmatpush1.bf16.msra.mxu0 0
        %2109 = vmatprep.mubr.bf16.mxu0 0
        %2110 = vmatmul.mubr.bf16.gmra.mrb[0].mxu0 %v2072
        %v2111 = vpop.f32.mrb[0].mxu0
        %v2112 = vadd.f32 0.0, %v2111
        %v2113 = vpop.f32.mrb[0].mxu0
        %v2114 = vpop.f32.mrb[0].mxu0
        %v2115 = vpop.f32.mrb[0].mxu0
        %2116 = vdwg.mxu0
        %v2117 = vpack.c.bf16 %v1968, %v1968
        %v2118 = vpack.c.bf16 %v2016, %v2016
        %v2119 = vpack.c.bf16 %v2064, %v2064
        %v2120 = vpack.c.bf16 %v2112, %v2112
        %s2121 = scalar_lea.vmem %s5, 16
        %v2122 = vld [vmem:[%s2121] sm:$0xf]
        %v2123 = vld [vmem:[%s2121 + $0x4] sm:$0xf]
        %v2124 = vld [vmem:[%s2121 + $0x8] sm:$0xf]
        %v2125 = vld [vmem:[%s2121 + $0xc] sm:$0xf]
        %v2127 = vsel %vm641, %v2117, 0
        %v2130 = vsel %vm888, %v2122, 0
        %2132 = vmatprep.subr.bf16.mxu0 0
        %2133 = vmatpush1.bf16.msra.mxu0 %v2130
        %2134 = vmatprep.subr.bf16.mxu0 0
        %2135 = vmatpush1.bf16.msra.mxu0 0
        %2136 = vmatprep.subr.bf16.mxu0 0
        %2137 = vmatpush1.bf16.msra.mxu0 0
        %2138 = vmatprep.subr.bf16.mxu0 0
        %2139 = vmatpush1.bf16.msra.mxu0 0
        %2140 = vmatprep.subr.bf16.mxu0 0
        %2141 = vmatpush1.bf16.msra.mxu0 0
        %2142 = vmatprep.subr.bf16.mxu0 0
        %2143 = vmatpush1.bf16.msra.mxu0 0
        %2144 = vmatprep.subr.bf16.mxu0 0
        %2145 = vmatpush1.bf16.msra.mxu0 0
        %2146 = vmatprep.subr.bf16.mxu0 0
        %2147 = vmatpush1.bf16.msra.mxu0 0
        %2148 = vmatprep.subr.bf16.mxu0 0
        %2149 = vmatpush1.bf16.msra.mxu0 0
        %2150 = vmatprep.subr.bf16.mxu0 0
        %2151 = vmatpush1.bf16.msra.mxu0 0
        %2152 = vmatprep.subr.bf16.mxu0 0
        %2153 = vmatpush1.bf16.msra.mxu0 0
        %2154 = vmatprep.subr.bf16.mxu0 0
        %2155 = vmatpush1.bf16.msra.mxu0 0
        %2156 = vmatprep.subr.bf16.mxu0 0
        %2157 = vmatpush1.bf16.msra.mxu0 0
        %2158 = vmatprep.subr.bf16.mxu0 0
        %2159 = vmatpush1.bf16.msra.mxu0 0
        %2160 = vmatprep.subr.bf16.mxu0 0
        %2161 = vmatpush1.bf16.msra.mxu0 0
        %2162 = vmatprep.subr.bf16.mxu0 0
        %2163 = vmatpush1.bf16.msra.mxu0 0
        %2164 = vmatprep.mubr.bf16.mxu0 0
        %2165 = vmatmul.mubr.bf16.gmra.mrb[0].mxu0 %v2127
        %v2166 = vpop.f32.mrb[0].mxu0
        %v2167 = vadd.f32 0.0, %v2166
        %v2168 = vpop.f32.mrb[0].mxu0
        %v2169 = vpop.f32.mrb[0].mxu0
        %v2170 = vpop.f32.mrb[0].mxu0
        %2171 = vdwg.mxu0
        %v2173 = vsel %vm641, %v2118, 0
        %v2176 = vsel %vm888, %v2123, 0
        %2178 = vmatprep.subr.bf16.mxu0 0
        %2179 = vmatpush1.bf16.msra.mxu0 %v2176
        %2180 = vmatprep.subr.bf16.mxu0 0
        %2181 = vmatpush1.bf16.msra.mxu0 0
        %2182 = vmatprep.subr.bf16.mxu0 0
        %2183 = vmatpush1.bf16.msra.mxu0 0
        %2184 = vmatprep.subr.bf16.mxu0 0
        %2185 = vmatpush1.bf16.msra.mxu0 0
        %2186 = vmatprep.subr.bf16.mxu0 0
        %2187 = vmatpush1.bf16.msra.mxu0 0
        %2188 = vmatprep.subr.bf16.mxu0 0
        %2189 = vmatpush1.bf16.msra.mxu0 0
        %2190 = vmatprep.subr.bf16.mxu0 0
        %2191 = vmatpush1.bf16.msra.mxu0 0
        %2192 = vmatprep.subr.bf16.mxu0 0
        %2193 = vmatpush1.bf16.msra.mxu0 0
        %2194 = vmatprep.subr.bf16.mxu0 0
        %2195 = vmatpush1.bf16.msra.mxu0 0
        %2196 = vmatprep.subr.bf16.mxu0 0
        %2197 = vmatpush1.bf16.msra.mxu0 0
        %2198 = vmatprep.subr.bf16.mxu0 0
        %2199 = vmatpush1.bf16.msra.mxu0 0
        %2200 = vmatprep.subr.bf16.mxu0 0
        %2201 = vmatpush1.bf16.msra.mxu0 0
        %2202 = vmatprep.subr.bf16.mxu0 0
        %2203 = vmatpush1.bf16.msra.mxu0 0
        %2204 = vmatprep.subr.bf16.mxu0 0
        %2205 = vmatpush1.bf16.msra.mxu0 0
        %2206 = vmatprep.subr.bf16.mxu0 0
        %2207 = vmatpush1.bf16.msra.mxu0 0
        %2208 = vmatprep.subr.bf16.mxu0 0
        %2209 = vmatpush1.bf16.msra.mxu0 0
        %2210 = vmatprep.mubr.bf16.mxu0 0
        %2211 = vmatmul.mubr.bf16.gmra.mrb[0].mxu0 %v2173
        %v2212 = vpop.f32.mrb[0].mxu0
        %v2213 = vadd.f32 0.0, %v2212
        %v2214 = vpop.f32.mrb[0].mxu0
        %v2215 = vpop.f32.mrb[0].mxu0
        %v2216 = vpop.f32.mrb[0].mxu0
        %2217 = vdwg.mxu0
        %v2219 = vsel %vm641, %v2119, 0
        %v2222 = vsel %vm888, %v2124, 0
        %2224 = vmatprep.subr.bf16.mxu0 0
        %2225 = vmatpush1.bf16.msra.mxu0 %v2222
        %2226 = vmatprep.subr.bf16.mxu0 0
        %2227 = vmatpush1.bf16.msra.mxu0 0
        %2228 = vmatprep.subr.bf16.mxu0 0
        %2229 = vmatpush1.bf16.msra.mxu0 0
        %2230 = vmatprep.subr.bf16.mxu0 0
        %2231 = vmatpush1.bf16.msra.mxu0 0
        %2232 = vmatprep.subr.bf16.mxu0 0
        %2233 = vmatpush1.bf16.msra.mxu0 0
        %2234 = vmatprep.subr.bf16.mxu0 0
        %2235 = vmatpush1.bf16.msra.mxu0 0
        %2236 = vmatprep.subr.bf16.mxu0 0
        %2237 = vmatpush1.bf16.msra.mxu0 0
        %2238 = vmatprep.subr.bf16.mxu0 0
        %2239 = vmatpush1.bf16.msra.mxu0 0
        %2240 = vmatprep.subr.bf16.mxu0 0
        %2241 = vmatpush1.bf16.msra.mxu0 0
        %2242 = vmatprep.subr.bf16.mxu0 0
        %2243 = vmatpush1.bf16.msra.mxu0 0
        %2244 = vmatprep.subr.bf16.mxu0 0
        %2245 = vmatpush1.bf16.msra.mxu0 0
        %2246 = vmatprep.subr.bf16.mxu0 0
        %2247 = vmatpush1.bf16.msra.mxu0 0
        %2248 = vmatprep.subr.bf16.mxu0 0
        %2249 = vmatpush1.bf16.msra.mxu0 0
        %2250 = vmatprep.subr.bf16.mxu0 0
        %2251 = vmatpush1.bf16.msra.mxu0 0
        %2252 = vmatprep.subr.bf16.mxu0 0
        %2253 = vmatpush1.bf16.msra.mxu0 0
        %2254 = vmatprep.subr.bf16.mxu0 0
        %2255 = vmatpush1.bf16.msra.mxu0 0
        %2256 = vmatprep.mubr.bf16.mxu0 0
        %2257 = vmatmul.mubr.bf16.gmra.mrb[0].mxu0 %v2219
        %v2258 = vpop.f32.mrb[0].mxu0
        %v2259 = vadd.f32 0.0, %v2258
        %v2260 = vpop.f32.mrb[0].mxu0
        %v2261 = vpop.f32.mrb[0].mxu0
        %v2262 = vpop.f32.mrb[0].mxu0
        %2263 = vdwg.mxu0
        %v2265 = vsel %vm641, %v2120, 0
        %v2268 = vsel %vm888, %v2125, 0
        %2270 = vmatprep.subr.bf16.mxu0 0
        %2271 = vmatpush1.bf16.msra.mxu0 %v2268
        %2272 = vmatprep.subr.bf16.mxu0 0
        %2273 = vmatpush1.bf16.msra.mxu0 0
        %2274 = vmatprep.subr.bf16.mxu0 0
        %2275 = vmatpush1.bf16.msra.mxu0 0
        %2276 = vmatprep.subr.bf16.mxu0 0
        %2277 = vmatpush1.bf16.msra.mxu0 0
        %2278 = vmatprep.subr.bf16.mxu0 0
        %2279 = vmatpush1.bf16.msra.mxu0 0
        %2280 = vmatprep.subr.bf16.mxu0 0
        %2281 = vmatpush1.bf16.msra.mxu0 0
        %2282 = vmatprep.subr.bf16.mxu0 0
        %2283 = vmatpush1.bf16.msra.mxu0 0
        %2284 = vmatprep.subr.bf16.mxu0 0
        %2285 = vmatpush1.bf16.msra.mxu0 0
        %2286 = vmatprep.subr.bf16.mxu0 0
        %2287 = vmatpush1.bf16.msra.mxu0 0
        %2288 = vmatprep.subr.bf16.mxu0 0
        %2289 = vmatpush1.bf16.msra.mxu0 0
        %2290 = vmatprep.subr.bf16.mxu0 0
        %2291 = vmatpush1.bf16.msra.mxu0 0
        %2292 = vmatprep.subr.bf16.mxu0 0
        %2293 = vmatpush1.bf16.msra.mxu0 0
        %2294 = vmatprep.subr.bf16.mxu0 0
        %2295 = vmatpush1.bf16.msra.mxu0 0
        %2296 = vmatprep.subr.bf16.mxu0 0
        %2297 = vmatpush1.bf16.msra.mxu0 0
        %2298 = vmatprep.subr.bf16.mxu0 0
        %2299 = vmatpush1.bf16.msra.mxu0 0
        %2300 = vmatprep.subr.bf16.mxu0 0
        %2301 = vmatpush1.bf16.msra.mxu0 0
        %2302 = vmatprep.mubr.bf16.mxu0 0
        %2303 = vmatmul.mubr.bf16.gmra.mrb[0].mxu0 %v2265
        %v2304 = vpop.f32.mrb[0].mxu0
        %v2305 = vadd.f32 0.0, %v2304
        %v2306 = vpop.f32.mrb[0].mxu0
        %v2307 = vpop.f32.mrb[0].mxu0
        %v2308 = vpop.f32.mrb[0].mxu0
        %2309 = vdwg.mxu0
        %v2310 = vsel %vm390, %v2167, 0.0
        %v2311 = vsel %vm390, %v2213, 0.0
        %v2312 = vadd.f32 %v2310, %v2311
        %v2313 = vsel %vm390, %v2259, 0.0
        %v2314 = vadd.f32 %v2312, %v2313
        %v2315 = vsel %vm390, %v2305, 0.0
        %v2316 = vadd.f32 %v2314, %v2315
        %v2317 = vadd.f32 %v1430, %v2316
        %s2318 = scalar_lea.vmem %s6, 1
        %v2319 = vld [vmem:[%s2318] sm:$0x1]
        %v2320 = vmul.f32 %v2317, %v2317
        %v2321 = vsel %vm390, %v2320, 0.0
        %2322 = vadd.xlane.f32.xlu0 %v2321
        %v2323 = vpop.xlane.xlu0 %2322
        %v2324 = vmul.f32 %v2323, %v394
        %v2325 = vadd.f32 %v2324, 1e-06
        %v2326 = vrsqrt.pop %v2325
        %v2327 = vmul.f32 %v2317, %v2326
        %v2329 = vlaneseq
        %v2330 = vshrl.u32 %v2329, 7
        %v2331 = vsub.s32 0, %v2330
        %v2332 = vrot.slane %v2319, %v2331
        %v2334 = vmul.f32 %v2327, %v2332
        %v2335 = vpack.c.bf16 %v2334, %v2334
        %s2336 = scalar_lea.vmem %s7, 16
        %v2337 = vld [vmem:[%s2336] sm:$0xf]
        %v2338 = vld [vmem:[%s2336 + $0x4] sm:$0xf]
        %v2339 = vld [vmem:[%s2336 + $0x8] sm:$0xf]
        %v2340 = vld [vmem:[%s2336 + $0xc] sm:$0xf]
        %v2345 = vunpack.c.l.b16 %v2337
        %v2346 = vunpack.c.l.b16 %v2338
        %v2347 = vunpack.c.l.b16 %v2339
        %v2348 = vunpack.c.l.b16 %v2340
        %v2349 = vpack.c.b16 %v2346, %v2345
        %v2350 = vpack.c.b16 %v2348, %v2347
        %v2354 = vsel %vm390, %v2335, 0
        %2356 = vmatprep.subr.bf16.mxu0 0
        %2357 = vmatpush1.bf16.msra.mxu0 %v2349
        %2358 = vmatprep.subr.bf16.mxu0 0
        %2359 = vmatpush1.bf16.msra.mxu0 %v2350
        %2360 = vmatprep.subr.bf16.mxu0 0
        %2361 = vmatpush1.bf16.msra.mxu0 0
        %2362 = vmatprep.subr.bf16.mxu0 0
        %2363 = vmatpush1.bf16.msra.mxu0 0
        %2364 = vmatprep.subr.bf16.mxu0 0
        %2365 = vmatpush1.bf16.msra.mxu0 0
        %2366 = vmatprep.subr.bf16.mxu0 0
        %2367 = vmatpush1.bf16.msra.mxu0 0
        %2368 = vmatprep.subr.bf16.mxu0 0
        %2369 = vmatpush1.bf16.msra.mxu0 0
        %2370 = vmatprep.subr.bf16.mxu0 0
        %2371 = vmatpush1.bf16.msra.mxu0 0
        %2372 = vmatprep.subr.bf16.mxu0 0
        %2373 = vmatpush1.bf16.msra.mxu0 0
        %2374 = vmatprep.subr.bf16.mxu0 0
        %2375 = vmatpush1.bf16.msra.mxu0 0
        %2376 = vmatprep.subr.bf16.mxu0 0
        %2377 = vmatpush1.bf16.msra.mxu0 0
        %2378 = vmatprep.subr.bf16.mxu0 0
        %2379 = vmatpush1.bf16.msra.mxu0 0
        %2380 = vmatprep.subr.bf16.mxu0 0
        %2381 = vmatpush1.bf16.msra.mxu0 0
        %2382 = vmatprep.subr.bf16.mxu0 0
        %2383 = vmatpush1.bf16.msra.mxu0 0
        %2384 = vmatprep.subr.bf16.mxu0 0
        %2385 = vmatpush1.bf16.msra.mxu0 0
        %2386 = vmatprep.subr.bf16.mxu0 0
        %2387 = vmatpush1.bf16.msra.mxu0 0
        %2388 = vmatprep.mubr.bf16.mxu0 0
        %2389 = vmatmul.mubr.bf16.gmra.mrb[0].mxu0 %v2354
        %v2390 = vpop.f32.mrb[0].mxu0
        %v2391 = vadd.f32 0.0, %v2390
        %v2392 = vpop.f32.mrb[0].mxu0
        %v2393 = vpop.f32.mrb[0].mxu0
        %v2394 = vpop.f32.mrb[0].mxu0
        %2395 = vdwg.mxu0
        %v2396 = vmax.f32 %v2391, 0.0
        %v2397 = vpack.c.bf16 %v2396, %v2396
        %s2398 = scalar_lea.vmem %s8, 32
        %v2399 = vld [vmem:[%s2398] sm:$0xf]
        %v2400 = vld [vmem:[%s2398 + $0x4] sm:$0xf]
        %v2401 = vld [vmem:[%s2398 + $0x8] sm:$0xf]
        %v2402 = vld [vmem:[%s2398 + $0xc] sm:$0xf]
        %v2403 = vld [vmem:[%s2398 + $0x10] sm:$0xf]
        %v2404 = vld [vmem:[%s2398 + $0x14] sm:$0xf]
        %v2405 = vld [vmem:[%s2398 + $0x18] sm:$0xf]
        %v2406 = vld [vmem:[%s2398 + $0x1c] sm:$0xf]
        %v2415 = vunpack.c.l.b16 %v2399
        %v2416 = vunpack.c.l.b16 %v2400
        %v2417 = vunpack.c.l.b16 %v2401
        %v2418 = vunpack.c.l.b16 %v2402
        %v2419 = vunpack.c.l.b16 %v2403
        %v2420 = vunpack.c.l.b16 %v2404
        %v2421 = vunpack.c.l.b16 %v2405
        %v2422 = vunpack.c.l.b16 %v2406
        %v2423 = vpack.c.b16 %v2416, %v2415
        %v2424 = vpack.c.b16 %v2418, %v2417
        %v2425 = vpack.c.b16 %v2420, %v2419
        %v2426 = vpack.c.b16 %v2422, %v2421
        %v2432 = vsel %vm1386, %v2397, 0
        %2434 = vmatprep.subr.bf16.mxu0 0
        %2435 = vmatpush1.bf16.msra.mxu0 %v2423
        %2436 = vmatprep.subr.bf16.mxu0 0
        %2437 = vmatpush1.bf16.msra.mxu0 %v2424
        %2438 = vmatprep.subr.bf16.mxu0 0
        %2439 = vmatpush1.bf16.msra.mxu0 %v2425
        %2440 = vmatprep.subr.bf16.mxu0 0
        %2441 = vmatpush1.bf16.msra.mxu0 %v2426
        %2442 = vmatprep.subr.bf16.mxu0 0
        %2443 = vmatpush1.bf16.msra.mxu0 0
        %2444 = vmatprep.subr.bf16.mxu0 0
        %2445 = vmatpush1.bf16.msra.mxu0 0
        %2446 = vmatprep.subr.bf16.mxu0 0
        %2447 = vmatpush1.bf16.msra.mxu0 0
        %2448 = vmatprep.subr.bf16.mxu0 0
        %2449 = vmatpush1.bf16.msra.mxu0 0
        %2450 = vmatprep.subr.bf16.mxu0 0
        %2451 = vmatpush1.bf16.msra.mxu0 0
        %2452 = vmatprep.subr.bf16.mxu0 0
        %2453 = vmatpush1.bf16.msra.mxu0 0
        %2454 = vmatprep.subr.bf16.mxu0 0
        %2455 = vmatpush1.bf16.msra.mxu0 0
        %2456 = vmatprep.subr.bf16.mxu0 0
        %2457 = vmatpush1.bf16.msra.mxu0 0
        %2458 = vmatprep.subr.bf16.mxu0 0
        %2459 = vmatpush1.bf16.msra.mxu0 0
        %2460 = vmatprep.subr.bf16.mxu0 0
        %2461 = vmatpush1.bf16.msra.mxu0 0
        %2462 = vmatprep.subr.bf16.mxu0 0
        %2463 = vmatpush1.bf16.msra.mxu0 0
        %2464 = vmatprep.subr.bf16.mxu0 0
        %2465 = vmatpush1.bf16.msra.mxu0 0
        %2466 = vmatprep.mubr.bf16.mxu0 0
        %2467 = vmatmul.mubr.bf16.gmra.mrb[0].mxu0 %v2432
        %v2468 = vpop.f32.mrb[0].mxu0
        %v2469 = vadd.f32 0.0, %v2468
        %v2470 = vpop.f32.mrb[0].mxu0
        %v2471 = vpop.f32.mrb[0].mxu0
        %v2472 = vpop.f32.mrb[0].mxu0
        %2473 = vdwg.mxu0
        %v2474 = vadd.f32 %v2317, %v2469
        %v2475 = vld [vmem:[%s9] sm:$0x1]
        %v2476 = vmul.f32 %v2474, %v2474
        %v2477 = vsel %vm390, %v2476, 0.0
        %2478 = vadd.xlane.f32.xlu0 %v2477
        %v2479 = vpop.xlane.xlu0 %2478
        %v2480 = vmul.f32 %v2479, %v394
        %v2481 = vadd.f32 %v2480, 1e-06
        %v2482 = vrsqrt.pop %v2481
        %v2483 = vmul.f32 %v2474, %v2482
        %v2485 = vlaneseq
        %v2486 = vshrl.u32 %v2485, 7
        %v2487 = vsub.s32 0, %v2486
        %v2488 = vrot.slane %v2475, %v2487
        %v2490 = vmul.f32 %v2483, %v2488
        %vm2491 = vcmask 257024
        %2492 = vst.msk [vmem:[%s361] sm:$0xf] %vm2491, %v2490
        %s2493 = sand.u32 %s252, 1
        %s2494 = scalar_lea.sflag [#allocation3], %s2493
        %s2495 = sand.u32 %s252, 1
        %s2496 = smul.addr %s2495, 4
        %s2497 = scalar_lea.vmem [#allocation2], %s2496
        // Predicated region
        $region61: #{t5_encoder_forward.1} parent=59 // pred_check
          %p2498 = pneg %p262
        $region62: #{t5_encoder_forward.1} parent=59 // pred_check_branch
          %2500 = sbr.rel (%p2498) target = $region64
        $region63: #{t5_encoder_forward.1} parent=59 // pred_region
          %s2502 = ssub.s32 64, 64
          %2503 = vsyncadd %s2494, %s2502
          %s2504 = smul.addr %s24, 64
          %s2505 = scalar_lea.hbm %s10, %s2504
          %s2507 = sshll.u32 %s2497, 4
          %s2508 = int_to_ptr.vmem [resolvable:$true] %s2507
          %2510 = dma.vmem_to_hbm [thread:$0]  %s2508, 64, %s2505, %s2494
        $region64: #{t5_encoder_forward.1} parent=59 // pred_fallthru
          _
      $region60: #{t5_encoder_forward.1} parent=5 // pred_fallthru
        _
      %p2511 = scmp.le.s32.totalorder 2, %s19
      // Predicated region
      $region65: #{t5_encoder_forward.1} parent=5 // pred_check
        %p2512 = pneg %p2511
      $region66: #{t5_encoder_forward.1} parent=5 // pred_check_branch
        %2514 = sbr.rel (%p2512) target = $region68
      $region67: #{t5_encoder_forward.1} parent=5 // pred_region
        %s2515 = ssub.s32 %s19, 2
        // Predicated region
        $region69: #{t5_encoder_forward.1} parent=67 // pred_check
          %p2516 = pneg %p268
        $region70: #{t5_encoder_forward.1} parent=67 // pred_check_branch
          %2518 = sbr.rel (%p2516) target = $region72
        $region71: #{t5_encoder_forward.1} parent=67 // pred_region
          %s2519 = sand.u32 %s253, 1
          %s2520 = scalar_lea.sflag [#allocation3], %s2519
          %s2521 = sand.u32 %s253, 1
          %s2522 = smul.addr %s2521, 4
          %s2523 = scalar_lea.vmem [#allocation2], %s2522
          %2524 = dma.done %s2520, 64
        $region72: #{t5_encoder_forward.1} parent=67 // pred_fallthru
          _
      $region68: #{t5_encoder_forward.1} parent=5 // pred_fallthru
        _
    $region6: #{t5_encoder_forward.1} parent=1 // loop_footer
      %s23 = sadd.s32 1, %s19
    $region7: #{t5_encoder_forward.1} parent=1 // loop_footer_branch
      %18 = sbr.rel target = $region3
    $region8: #{t5_encoder_forward.1} parent=1 // loop_exit
      _
    %2525 = vsyncpa [#allocation3], 1
    %s2526 = scalar_lea.sflag [#allocation3], 1
    %2527 = vsyncpa %s2526, 1

</llo_original>
